<compile_context>
chip_gen: v6e
topology: v6e:2x2x1
jax: 0.10.0
libtpu: 0.0.40
codegen_flags: <defaults>
</compile_context>

<pallas_src>
import math

import jax
import jax.numpy as jnp
from jax.experimental import pallas as pl
from jax.experimental.pallas import tpu as pltpu

# ----------------------------- model dims (small, synthetic) -----------------------------
BATCH = 2
SEQ = 8
HIDDEN = 32
N_LAYERS = 2
N_HEADS = 2
HEAD_DIM = HIDDEN // N_HEADS
FFN = 64
VOCAB = 100
MAX_POS = 32
NUM_CLASSES = 22          # len(key) in the reference Config
NC_PAD = 128              # lane-dense padded logits width
LN_EPS = 1e-12


# ----------------------------------- fused Pallas kernel ---------------------------------
def _fused_encoder_kernel(x_ref, mask_ref, embg_ref, embb_ref,
                          wqkv_ref, bqkv_ref, wo_ref, bo_ref,
                          ln1g_ref, ln1b_ref, wi_ref, bi_ref,
                          wf_ref, bf_ref, ln2g_ref, ln2b_ref,
                          wp_ref, bp_ref, wfc_ref, bfc_ref,
                          out_ref, h_scratch, ctx_scratch):
    """One grid step == (one sequence, one transformer layer).

    Grid = (BATCH, N_LAYERS); batch axis is 'parallel', layer axis 'arbitrary'.
    h_scratch holds the (SEQ, HIDDEN) hidden state of the current sequence across layers.
    """
    l = pl.program_id(1)

    def layernorm(x, g, b):
        mu = jnp.mean(x, axis=-1, keepdims=True)
        d = x - mu
        var = jnp.mean(d * d, axis=-1, keepdims=True)
        return d * jax.lax.rsqrt(var + LN_EPS) * g + b

    # ---- layer 0: embedding LayerNorm once, seed the resident hidden state ----
    @pl.when(l == 0)
    def _():
        h_scratch[...] = layernorm(x_ref[0], embg_ref[...], embb_ref[...])

    h = h_scratch[...]                               # (S, H) f32
    h_bf = h.astype(jnp.bfloat16)

    # ---- fused QKV projection: one (H, 3H) bf16 matmul, f32 accumulate ----
    qkv = jnp.dot(h_bf, wqkv_ref[0],
                  preferred_element_type=jnp.float32) + bqkv_ref[0]   # (S, 3H) f32

    bias = mask_ref[0]                               # (1, S) additive key-mask

    # ---- self-attention: static loop over heads only; per-head context written
    #      straight into ctx_scratch (no concatenate, no batch loop) ----
    for hh in range(N_HEADS):
        c0 = hh * HEAD_DIM
        q = qkv[:, c0:c0 + HEAD_DIM].astype(jnp.bfloat16)                          # (S, hd)
        k = qkv[:, HIDDEN + c0:HIDDEN + c0 + HEAD_DIM].astype(jnp.bfloat16)        # (S, hd)
        v = qkv[:, 2 * HIDDEN + c0:2 * HIDDEN + c0 + HEAD_DIM].astype(jnp.bfloat16)

        # scores = q @ k^T ; the 1/sqrt(hd) scale is folded into wq at prep time
        s = jax.lax.dot_general(q, k, (((1,), (1,)), ((), ())),
                                preferred_element_type=jnp.float32)                # (S, S)
        s = s + bias
        m = jnp.max(s, axis=-1, keepdims=True)
        p = jnp.exp(s - m)
        denom = jnp.sum(p, axis=-1, keepdims=True)
        p = p * pl.reciprocal(denom, approx=True)                                  # EUP slot
        ctx_scratch[:, c0:c0 + HEAD_DIM] = jnp.dot(
            p.astype(jnp.bfloat16), v, preferred_element_type=jnp.float32)

    ctx = ctx_scratch[...].astype(jnp.bfloat16)                                    # (S, H)

    # ---- attention output projection + residual + LayerNorm ----
    attn_out = jnp.dot(ctx, wo_ref[0], preferred_element_type=jnp.float32) + bo_ref[0]
    h1 = layernorm(h + attn_out, ln1g_ref[0], ln1b_ref[0])

    # ---- feed-forward (GELU, tanh approx) + residual + LayerNorm ----
    inter = jnp.dot(h1.astype(jnp.bfloat16), wi_ref[0],
                    preferred_element_type=jnp.float32) + bi_ref[0]                # (S, FFN)
    c = math.sqrt(2.0 / math.pi)
    inter = 0.5 * inter * (1.0 + jnp.tanh(c * (inter + 0.044715 * inter * inter * inter)))
    ffn_out = jnp.dot(inter.astype(jnp.bfloat16), wf_ref[0],
                      preferred_element_type=jnp.float32) + bf_ref[0]
    h2 = layernorm(h1 + ffn_out, ln2g_ref[0], ln2b_ref[0])
    h_scratch[...] = h2

    # ---- last layer: pooler ([CLS] -> dense+tanh) + classifier head, in-kernel ----
    @pl.when(l == pl.num_programs(1) - 1)
    def _():
        cls = h2[0:1, :].astype(jnp.bfloat16)                                      # (1, H)
        pooled = jnp.tanh(
            jnp.dot(cls, wp_ref[...], preferred_element_type=jnp.float32) + bp_ref[...])
        logits = jnp.dot(pooled.astype(jnp.bfloat16), wfc_ref[...],
                         preferred_element_type=jnp.float32) + bfc_ref[...]        # (1, 128)
        out_ref[0] = logits.astype(out_ref.dtype)


# ------------------------------------- parameters -----------------------------------------
def init_params(seed=0):
    key = jax.random.PRNGKey(seed)
    ks = iter(jax.random.split(key, 32))

    def w(k, *shape):
        return 0.02 * jax.random.normal(k, shape, jnp.float32)

    p = {}
    p["word_emb"] = w(next(ks), VOCAB, HIDDEN)
    p["pos_emb"] = w(next(ks), MAX_POS, HIDDEN)
    p["type_emb"] = w(next(ks), 2, HIDDEN)
    p["emb_ln_g"] = jnp.ones((1, HIDDEN), jnp.float32)
    p["emb_ln_b"] = jnp.zeros((1, HIDDEN), jnp.float32)

    # per-layer weights stacked along the layer axis (inner grid axis of the kernel);
    # matmul weights are stored bf16 in HBM (halves weight streaming + VMEM footprint).
    scale = 1.0 / math.sqrt(HEAD_DIM)
    wqkv = w(next(ks), N_LAYERS, HIDDEN, 3 * HIDDEN)
    wqkv = wqkv.at[:, :, :HIDDEN].multiply(scale)        # fold attn scale into Q columns
    bqkv = jnp.zeros((N_LAYERS, 1, 3 * HIDDEN), jnp.float32)
    bqkv = bqkv.at[:, :, :HIDDEN].multiply(scale)        # (Q bias scaled too; zeros here)

    p["wqkv"] = wqkv.astype(jnp.bfloat16)
    p["bqkv"] = bqkv
    p["wo"] = w(next(ks), N_LAYERS, HIDDEN, HIDDEN).astype(jnp.bfloat16)
    p["bo"] = jnp.zeros((N_LAYERS, 1, HIDDEN), jnp.float32)
    p["ln1_g"] = jnp.ones((N_LAYERS, 1, HIDDEN), jnp.float32)
    p["ln1_b"] = jnp.zeros((N_LAYERS, 1, HIDDEN), jnp.float32)
    p["wi"] = w(next(ks), N_LAYERS, HIDDEN, FFN).astype(jnp.bfloat16)
    p["bi"] = jnp.zeros((N_LAYERS, 1, FFN), jnp.float32)
    p["wf"] = w(next(ks), N_LAYERS, FFN, HIDDEN).astype(jnp.bfloat16)
    p["bf"] = jnp.zeros((N_LAYERS, 1, HIDDEN), jnp.float32)
    p["ln2_g"] = jnp.ones((N_LAYERS, 1, HIDDEN), jnp.float32)
    p["ln2_b"] = jnp.zeros((N_LAYERS, 1, HIDDEN), jnp.float32)

    p["wp"] = w(next(ks), HIDDEN, HIDDEN).astype(jnp.bfloat16)       # pooler
    p["bp"] = jnp.zeros((1, HIDDEN), jnp.float32)

    # classifier head padded lane-dense to 128 output columns (unmasked vst in-kernel)
    wfc = jnp.zeros((HIDDEN, NC_PAD), jnp.float32)
    wfc = wfc.at[:, :NUM_CLASSES].set(w(next(ks), HIDDEN, NUM_CLASSES))
    p["wfc"] = wfc.astype(jnp.bfloat16)
    p["bfc"] = jnp.zeros((1, NC_PAD), jnp.float32)
    return p


# ------------------------------------- forward pass ---------------------------------------
def model_forward(params, context, mask):
    """context:(B,S) int32 token ids, mask:(B,S) {0,1}.  Returns logits (B, NUM_CLASSES)."""
    B, S = context.shape

    # ---- embeddings (gather is XLA glue; the LayerNorm happens inside the kernel) ----
    h = (jnp.take(params["word_emb"], context, axis=0)
         + params["pos_emb"][None, :S, :]
         + params["type_emb"][0][None, None, :])                     # (B, S, H) f32

    mask_bias = ((1.0 - mask.astype(jnp.float32)) * -10000.0).reshape(B, 1, S)

    grid_spec = pltpu.PrefetchScalarGridSpec(
        num_scalar_prefetch=0,
        grid=(B, N_LAYERS),                                   # (parallel, arbitrary)
        in_specs=[
            pl.BlockSpec((1, S, HIDDEN), lambda b, l: (b, 0, 0)),             # embeddings
            pl.BlockSpec((1, 1, S), lambda b, l: (b, 0, 0)),                  # mask bias
            pl.BlockSpec((1, HIDDEN), lambda b, l: (0, 0)),                   # emb_ln_g
            pl.BlockSpec((1, HIDDEN), lambda b, l: (0, 0)),                   # emb_ln_b
            pl.BlockSpec((1, HIDDEN, 3 * HIDDEN), lambda b, l: (l, 0, 0)),    # wqkv (bf16)
            pl.BlockSpec((1, 1, 3 * HIDDEN), lambda b, l: (l, 0, 0)),         # bqkv
            pl.BlockSpec((1, HIDDEN, HIDDEN), lambda b, l: (l, 0, 0)),        # wo (bf16)
            pl.BlockSpec((1, 1, HIDDEN), lambda b, l: (l, 0, 0)),             # bo
            pl.BlockSpec((1, 1, HIDDEN), lambda b, l: (l, 0, 0)),             # ln1_g
            pl.BlockSpec((1, 1, HIDDEN), lambda b, l: (l, 0, 0)),             # ln1_b
            pl.BlockSpec((1, HIDDEN, FFN), lambda b, l: (l, 0, 0)),           # wi (bf16)
            pl.BlockSpec((1, 1, FFN), lambda b, l: (l, 0, 0)),                # bi
            pl.BlockSpec((1, FFN, HIDDEN), lambda b, l: (l, 0, 0)),           # wf (bf16)
            pl.BlockSpec((1, 1, HIDDEN), lambda b, l: (l, 0, 0)),             # bf
            pl.BlockSpec((1, 1, HIDDEN), lambda b, l: (l, 0, 0)),             # ln2_g
            pl.BlockSpec((1, 1, HIDDEN), lambda b, l: (l, 0, 0)),             # ln2_b
            # TODO(synk): at real BERT-base scale, move the pooler/fc epilogue weights to
            # memory_space=pl.ANY + a single manual copy at the last layer to free VMEM.
            pl.BlockSpec((HIDDEN, HIDDEN), lambda b, l: (0, 0)),              # wp (bf16)
            pl.BlockSpec((1, HIDDEN), lambda b, l: (0, 0)),                   # bp
            pl.BlockSpec((HIDDEN, NC_PAD), lambda b, l: (0, 0)),              # wfc (bf16)
            pl.BlockSpec((1, NC_PAD), lambda b, l: (0, 0)),                   # bfc
        ],
        out_specs=pl.BlockSpec((1, 1, NC_PAD), lambda b, l: (b, 0, 0)),
        scratch_shapes=[pltpu.VMEM((S, HIDDEN), jnp.float32),                 # resident h
                        pltpu.VMEM((S, HIDDEN), jnp.float32)],                # ctx scratch
    )

    logits_pad = pl.pallas_call(
        _fused_encoder_kernel,
        out_shape=jax.ShapeDtypeStruct((B, 1, NC_PAD), jnp.float32),
        grid_spec=grid_spec,
        compiler_params=pltpu.CompilerParams(
            dimension_semantics=("parallel", "arbitrary"),   # batch || , layers sequential
            vmem_limit_bytes=64 * 1024 * 1024),
    )(h, mask_bias,
      params["emb_ln_g"], params["emb_ln_b"],
      params["wqkv"], params["bqkv"],
      params["wo"], params["bo"],
      params["ln1_g"], params["ln1_b"],
      params["wi"], params["bi"],
      params["wf"], params["bf"],
      params["ln2_g"], params["ln2_b"],
      params["wp"], params["bp"],
      params["wfc"], params["bfc"])

    return logits_pad[:, 0, :NUM_CLASSES]                     # (B, 22)


# TODO(synk): BertTokenizer / pretrained ERNIE checkpoint loading has no Pallas equivalent;
#             token ids are synthesized and weights are deterministically initialized.

if __name__ == "__main__":
    params = init_params(seed=0)

    key = jax.random.PRNGKey(0)
    k_ids, _ = jax.random.split(key)
    context = jax.random.randint(k_ids, (BATCH, SEQ), 0, VOCAB, dtype=jnp.int32)
    # second example has 2 padding positions masked out
    mask = jnp.array([[1] * SEQ, [1] * (SEQ - 2) + [0, 0]], dtype=jnp.int32)

    logits = jax.jit(model_forward)(params, context, mask)
    jax.block_until_ready(logits)
    assert logits.shape == (BATCH, NUM_CLASSES)
    print("KERNEL_OK")
</pallas_src>

<mosaic_0001>
module attributes {stable_mosaic.version = 11 : i64} {
  func.func @_fused_encoder_kernel(%arg0: i32, %arg1: i32, %arg2: memref<1x8x32xf32, #tpu.memory_space<vmem>>, %arg3: memref<1x1x8xf32, #tpu.memory_space<vmem>>, %arg4: memref<1x32xf32, #tpu.memory_space<vmem>>, %arg5: memref<1x32xf32, #tpu.memory_space<vmem>>, %arg6: memref<1x32x96xbf16, #tpu.memory_space<vmem>>, %arg7: memref<1x1x96xf32, #tpu.memory_space<vmem>>, %arg8: memref<1x32x32xbf16, #tpu.memory_space<vmem>>, %arg9: memref<1x1x32xf32, #tpu.memory_space<vmem>>, %arg10: memref<1x1x32xf32, #tpu.memory_space<vmem>>, %arg11: memref<1x1x32xf32, #tpu.memory_space<vmem>>, %arg12: memref<1x32x64xbf16, #tpu.memory_space<vmem>>, %arg13: memref<1x1x64xf32, #tpu.memory_space<vmem>>, %arg14: memref<1x64x32xbf16, #tpu.memory_space<vmem>>, %arg15: memref<1x1x32xf32, #tpu.memory_space<vmem>>, %arg16: memref<1x1x32xf32, #tpu.memory_space<vmem>>, %arg17: memref<1x1x32xf32, #tpu.memory_space<vmem>>, %arg18: memref<32x32xbf16, #tpu.memory_space<vmem>>, %arg19: memref<1x32xf32, #tpu.memory_space<vmem>>, %arg20: memref<32x128xbf16, #tpu.memory_space<vmem>>, %arg21: memref<1x128xf32, #tpu.memory_space<vmem>>, %arg22: memref<1x1x128xf32, #tpu.memory_space<vmem>>, %arg23: memref<8x32xf32, #tpu.memory_space<vmem>>, %arg24: memref<8x32xf32, #tpu.memory_space<vmem>>) attributes {dimension_semantics = [#tpu.dimension_semantics<parallel>, #tpu.dimension_semantics<arbitrary>], iteration_bounds = array<i64: 2, 2>, scalar_prefetch = 0 : i64, scratch_operands = 2 : i64, tpu.core_type = #tpu.core_type<tc>, window_params = [{transform_indices = @transform_0, window_bounds = array<i64: 1, 8, 32>}, {transform_indices = @transform_1, window_bounds = array<i64: 1, 1, 8>}, {pipeline_mode = #tpu.pipeline_mode<synchronous>, transform_indices = @transform_2, window_bounds = array<i64: 1, 32>}, {pipeline_mode = #tpu.pipeline_mode<synchronous>, transform_indices = @transform_3, window_bounds = array<i64: 1, 32>}, {transform_indices = @transform_4, window_bounds = array<i64: 1, 32, 96>}, {transform_indices = @transform_5, window_bounds = array<i64: 1, 1, 96>}, {transform_indices = @transform_6, window_bounds = array<i64: 1, 32, 32>}, {transform_indices = @transform_7, window_bounds = array<i64: 1, 1, 32>}, {transform_indices = @transform_8, window_bounds = array<i64: 1, 1, 32>}, {transform_indices = @transform_9, window_bounds = array<i64: 1, 1, 32>}, {transform_indices = @transform_10, window_bounds = array<i64: 1, 32, 64>}, {transform_indices = @transform_11, window_bounds = array<i64: 1, 1, 64>}, {transform_indices = @transform_12, window_bounds = array<i64: 1, 64, 32>}, {transform_indices = @transform_13, window_bounds = array<i64: 1, 1, 32>}, {transform_indices = @transform_14, window_bounds = array<i64: 1, 1, 32>}, {transform_indices = @transform_15, window_bounds = array<i64: 1, 1, 32>}, {pipeline_mode = #tpu.pipeline_mode<synchronous>, transform_indices = @transform_16, window_bounds = array<i64: 32, 32>}, {pipeline_mode = #tpu.pipeline_mode<synchronous>, transform_indices = @transform_17, window_bounds = array<i64: 1, 32>}, {pipeline_mode = #tpu.pipeline_mode<synchronous>, transform_indices = @transform_18, window_bounds = array<i64: 32, 128>}, {pipeline_mode = #tpu.pipeline_mode<synchronous>, transform_indices = @transform_19, window_bounds = array<i64: 1, 128>}, {transform_indices = @transform_20, window_bounds = array<i64: 1, 1, 128>}]} {
    %c0_i32 = arith.constant 0 : i32
    %0 = arith.cmpi eq, %arg1, %c0_i32 : i32
    %1 = arith.extui %0 : i1 to i32
    %c0_i32_0 = arith.constant 0 : i32
    %2 = arith.cmpi ne, %1, %c0_i32_0 : i32
    scf.if %2 {
      %c0_74 = arith.constant 0 : index
      %c0_75 = arith.constant 0 : index
      %c0_76 = arith.constant 0 : index
      %150 = vector.load %arg2[%c0_74, %c0_75, %c0_76] : memref<1x8x32xf32, #tpu.memory_space<vmem>>, vector<1x8x32xf32>
      %151 = vector.shape_cast %150 : vector<1x8x32xf32> to vector<8x32xf32>
      %c0_77 = arith.constant 0 : index
      %c0_78 = arith.constant 0 : index
      %152 = vector.load %arg4[%c0_77, %c0_78] : memref<1x32xf32, #tpu.memory_space<vmem>>, vector<1x32xf32>
      %c0_79 = arith.constant 0 : index
      %c0_80 = arith.constant 0 : index
      %153 = vector.load %arg5[%c0_79, %c0_80] : memref<1x32xf32, #tpu.memory_space<vmem>>, vector<1x32xf32>
      %cst_81 = arith.constant dense<0.000000e+00> : vector<8xf32>
      %154 = vector.multi_reduction <add>, %151, %cst_81 [1] : vector<8x32xf32> to vector<8xf32>
      %155 = vector.shape_cast %154 : vector<8xf32> to vector<8x1xf32>
      %cst_82 = arith.constant 3.200000e+01 : f32
      %156 = vector.broadcast %cst_82 : f32 to vector<8x1xf32>
      %157 = arith.divf %155, %156 : vector<8x1xf32>
      %158 = vector.broadcast %157 : vector<8x1xf32> to vector<8x32xf32>
      %159 = arith.subf %151, %158 : vector<8x32xf32>
      %160 = arith.mulf %159, %159 : vector<8x32xf32>
      %cst_83 = arith.constant dense<0.000000e+00> : vector<8xf32>
      %161 = vector.multi_reduction <add>, %160, %cst_83 [1] : vector<8x32xf32> to vector<8xf32>
      %162 = vector.shape_cast %161 : vector<8xf32> to vector<8x1xf32>
      %cst_84 = arith.constant 3.200000e+01 : f32
      %163 = vector.broadcast %cst_84 : f32 to vector<8x1xf32>
      %164 = arith.divf %162, %163 : vector<8x1xf32>
      %cst_85 = arith.constant 9.99999996E-13 : f32
      %165 = vector.broadcast %cst_85 : f32 to vector<8x1xf32>
      %166 = arith.addf %164, %165 : vector<8x1xf32>
      %167 = math.rsqrt %166 : vector<8x1xf32>
      %168 = vector.broadcast %167 : vector<8x1xf32> to vector<8x32xf32>
      %169 = arith.mulf %159, %168 : vector<8x32xf32>
      %170 = vector.broadcast %152 : vector<1x32xf32> to vector<8x32xf32>
      %171 = arith.mulf %169, %170 : vector<8x32xf32>
      %172 = vector.broadcast %153 : vector<1x32xf32> to vector<8x32xf32>
      %173 = arith.addf %171, %172 : vector<8x32xf32>
      %c0_86 = arith.constant 0 : index
      %c0_87 = arith.constant 0 : index
      %174 = vector.load %arg23[%c0_86, %c0_87] : memref<8x32xf32, #tpu.memory_space<vmem>>, vector<8x32xf32>
      tpu.vector_store %arg23[%c0_86, %c0_87], %173 {strides = array<i32>} : memref<8x32xf32, #tpu.memory_space<vmem>>, vector<8x32xf32>,
    } else {
    }
    %c0 = arith.constant 0 : index
    %c0_1 = arith.constant 0 : index
    %3 = vector.load %arg23[%c0, %c0_1] : memref<8x32xf32, #tpu.memory_space<vmem>>, vector<8x32xf32>
    %4 = arith.truncf %3 : vector<8x32xf32> to vector<8x32xbf16>
    %c0_2 = arith.constant 0 : index
    %c0_3 = arith.constant 0 : index
    %c0_4 = arith.constant 0 : index
    %5 = vector.load %arg6[%c0_2, %c0_3, %c0_4] : memref<1x32x96xbf16, #tpu.memory_space<vmem>>, vector<1x32x96xbf16>
    %6 = vector.shape_cast %5 : vector<1x32x96xbf16> to vector<32x96xbf16>
    %cst = arith.constant dense<0.000000e+00> : vector<8x96xf32>
    %7 = tpu.matmul %4, %6, %cst {dimension_numbers = #tpu.dot_dimension_numbers<[1], [0], [0], [1], [0, 0, 1, 1], [], []>} : vector<8x32xbf16>, vector<32x96xbf16>, vector<8x96xf32> -> vector<8x96xf32>
    %c0_5 = arith.constant 0 : index
    %c0_6 = arith.constant 0 : index
    %c0_7 = arith.constant 0 : index
    %8 = vector.load %arg7[%c0_5, %c0_6, %c0_7] : memref<1x1x96xf32, #tpu.memory_space<vmem>>, vector<1x1x96xf32>
    %9 = vector.shape_cast %8 : vector<1x1x96xf32> to vector<1x96xf32>
    %10 = vector.broadcast %9 : vector<1x96xf32> to vector<8x96xf32>
    %11 = arith.addf %7, %10 : vector<8x96xf32>
    %c0_8 = arith.constant 0 : index
    %c0_9 = arith.constant 0 : index
    %c0_10 = arith.constant 0 : index
    %12 = vector.load %arg3[%c0_8, %c0_9, %c0_10] : memref<1x1x8xf32, #tpu.memory_space<vmem>>, vector<1x1x8xf32>
    %13 = vector.shape_cast %12 : vector<1x1x8xf32> to vector<1x8xf32>
    %14 = vector.extract_strided_slice %11 {offsets = [0, 0], sizes = [8, 16], strides = [1, 1]} : vector<8x96xf32> to vector<8x16xf32>
    %15 = arith.truncf %14 : vector<8x16xf32> to vector<8x16xbf16>
    %16 = vector.extract_strided_slice %11 {offsets = [0, 32], sizes = [8, 16], strides = [1, 1]} : vector<8x96xf32> to vector<8x16xf32>
    %17 = arith.truncf %16 : vector<8x16xf32> to vector<8x16xbf16>
    %18 = vector.extract_strided_slice %11 {offsets = [0, 64], sizes = [8, 16], strides = [1, 1]} : vector<8x96xf32> to vector<8x16xf32>
    %19 = arith.truncf %18 : vector<8x16xf32> to vector<8x16xbf16>
    %cst_11 = arith.constant dense<0.000000e+00> : vector<8x8xf32>
    %20 = tpu.matmul %15, %17, %cst_11 {dimension_numbers = #tpu.dot_dimension_numbers<[1], [1], [0], [0], [0, 0, 1, 0], [], []>} : vector<8x16xbf16>, vector<8x16xbf16>, vector<8x8xf32> -> vector<8x8xf32>
    %21 = vector.broadcast %13 : vector<1x8xf32> to vector<8x8xf32>
    %22 = arith.addf %20, %21 : vector<8x8xf32>
    %cst_12 = arith.constant dense<0xFF800000> : vector<8xf32>
    %23 = vector.multi_reduction <maximumf>, %22, %cst_12 [1] : vector<8x8xf32> to vector<8xf32>
    %24 = vector.shape_cast %23 : vector<8xf32> to vector<8x1xf32>
    %25 = vector.broadcast %24 : vector<8x1xf32> to vector<8x8xf32>
    %26 = arith.subf %22, %25 : vector<8x8xf32>
    %27 = math.exp %26 : vector<8x8xf32>
    %cst_13 = arith.constant dense<0.000000e+00> : vector<8xf32>
    %28 = vector.multi_reduction <add>, %27, %cst_13 [1] : vector<8x8xf32> to vector<8xf32>
    %29 = vector.shape_cast %28 : vector<8xf32> to vector<8x1xf32>
    %30 = tpu.reciprocal %29 {approx = true} : vector<8x1xf32> -> vector<8x1xf32>
    %31 = vector.broadcast %30 : vector<8x1xf32> to vector<8x8xf32>
    %32 = arith.mulf %27, %31 : vector<8x8xf32>
    %33 = arith.truncf %32 : vector<8x8xf32> to vector<8x8xbf16>
    %cst_14 = arith.constant dense<0.000000e+00> : vector<8x16xf32>
    %34 = tpu.matmul %33, %19, %cst_14 {dimension_numbers = #tpu.dot_dimension_numbers<[1], [0], [0], [1], [0, 0, 1, 1], [], []>} : vector<8x8xbf16>, vector<8x16xbf16>, vector<8x16xf32> -> vector<8x16xf32>
    %c0_15 = arith.constant 0 : index
    %c0_16 = arith.constant 0 : index
    %35 = vector.load %arg24[%c0_15, %c0_16] : memref<8x32xf32, #tpu.memory_space<vmem>>, vector<8x16xf32>
    tpu.vector_store %arg24[%c0_15, %c0_16], %34 {strides = array<i32>} : memref<8x32xf32, #tpu.memory_space<vmem>>, vector<8x16xf32>,
    %36 = vector.extract_strided_slice %11 {offsets = [0, 16], sizes = [8, 16], strides = [1, 1]} : vector<8x96xf32> to vector<8x16xf32>
    %37 = arith.truncf %36 : vector<8x16xf32> to vector<8x16xbf16>
    %38 = vector.extract_strided_slice %11 {offsets = [0, 48], sizes = [8, 16], strides = [1, 1]} : vector<8x96xf32> to vector<8x16xf32>
    %39 = arith.truncf %38 : vector<8x16xf32> to vector<8x16xbf16>
    %40 = vector.extract_strided_slice %11 {offsets = [0, 80], sizes = [8, 16], strides = [1, 1]} : vector<8x96xf32> to vector<8x16xf32>
    %41 = arith.truncf %40 : vector<8x16xf32> to vector<8x16xbf16>
    %cst_17 = arith.constant dense<0.000000e+00> : vector<8x8xf32>
    %42 = tpu.matmul %37, %39, %cst_17 {dimension_numbers = #tpu.dot_dimension_numbers<[1], [1], [0], [0], [0, 0, 1, 0], [], []>} : vector<8x16xbf16>, vector<8x16xbf16>, vector<8x8xf32> -> vector<8x8xf32>
    %43 = vector.broadcast %13 : vector<1x8xf32> to vector<8x8xf32>
    %44 = arith.addf %42, %43 : vector<8x8xf32>
    %cst_18 = arith.constant dense<0xFF800000> : vector<8xf32>
    %45 = vector.multi_reduction <maximumf>, %44, %cst_18 [1] : vector<8x8xf32> to vector<8xf32>
    %46 = vector.shape_cast %45 : vector<8xf32> to vector<8x1xf32>
    %47 = vector.broadcast %46 : vector<8x1xf32> to vector<8x8xf32>
    %48 = arith.subf %44, %47 : vector<8x8xf32>
    %49 = math.exp %48 : vector<8x8xf32>
    %cst_19 = arith.constant dense<0.000000e+00> : vector<8xf32>
    %50 = vector.multi_reduction <add>, %49, %cst_19 [1] : vector<8x8xf32> to vector<8xf32>
    %51 = vector.shape_cast %50 : vector<8xf32> to vector<8x1xf32>
    %52 = tpu.reciprocal %51 {approx = true} : vector<8x1xf32> -> vector<8x1xf32>
    %53 = vector.broadcast %52 : vector<8x1xf32> to vector<8x8xf32>
    %54 = arith.mulf %49, %53 : vector<8x8xf32>
    %55 = arith.truncf %54 : vector<8x8xf32> to vector<8x8xbf16>
    %cst_20 = arith.constant dense<0.000000e+00> : vector<8x16xf32>
    %56 = tpu.matmul %55, %41, %cst_20 {dimension_numbers = #tpu.dot_dimension_numbers<[1], [0], [0], [1], [0, 0, 1, 1], [], []>} : vector<8x8xbf16>, vector<8x16xbf16>, vector<8x16xf32> -> vector<8x16xf32>
    %c0_21 = arith.constant 0 : index
    %c16 = arith.constant 16 : index
    %57 = vector.load %arg24[%c0_21, %c16] : memref<8x32xf32, #tpu.memory_space<vmem>>, vector<8x16xf32>
    tpu.vector_store %arg24[%c0_21, %c16], %56 {strides = array<i32>} : memref<8x32xf32, #tpu.memory_space<vmem>>, vector<8x16xf32>,
    %c0_22 = arith.constant 0 : index
    %c0_23 = arith.constant 0 : index
    %58 = vector.load %arg24[%c0_22, %c0_23] : memref<8x32xf32, #tpu.memory_space<vmem>>, vector<8x32xf32>
    %59 = arith.truncf %58 : vector<8x32xf32> to vector<8x32xbf16>
    %c0_24 = arith.constant 0 : index
    %c0_25 = arith.constant 0 : index
    %c0_26 = arith.constant 0 : index
    %60 = vector.load %arg8[%c0_24, %c0_25, %c0_26] : memref<1x32x32xbf16, #tpu.memory_space<vmem>>, vector<1x32x32xbf16>
    %61 = vector.shape_cast %60 : vector<1x32x32xbf16> to vector<32x32xbf16>
    %cst_27 = arith.constant dense<0.000000e+00> : vector<8x32xf32>
    %62 = tpu.matmul %59, %61, %cst_27 {dimension_numbers = #tpu.dot_dimension_numbers<[1], [0], [0], [1], [0, 0, 1, 1], [], []>} : vector<8x32xbf16>, vector<32x32xbf16>, vector<8x32xf32> -> vector<8x32xf32>
    %c0_28 = arith.constant 0 : index
    %c0_29 = arith.constant 0 : index
    %c0_30 = arith.constant 0 : index
    %63 = vector.load %arg9[%c0_28, %c0_29, %c0_30] : memref<1x1x32xf32, #tpu.memory_space<vmem>>, vector<1x1x32xf32>
    %64 = vector.shape_cast %63 : vector<1x1x32xf32> to vector<1x32xf32>
    %65 = vector.broadcast %64 : vector<1x32xf32> to vector<8x32xf32>
    %66 = arith.addf %62, %65 : vector<8x32xf32>
    %67 = arith.addf %3, %66 : vector<8x32xf32>
    %c0_31 = arith.constant 0 : index
    %c0_32 = arith.constant 0 : index
    %c0_33 = arith.constant 0 : index
    %68 = vector.load %arg10[%c0_31, %c0_32, %c0_33] : memref<1x1x32xf32, #tpu.memory_space<vmem>>, vector<1x1x32xf32>
    %69 = vector.shape_cast %68 : vector<1x1x32xf32> to vector<1x32xf32>
    %c0_34 = arith.constant 0 : index
    %c0_35 = arith.constant 0 : index
    %c0_36 = arith.constant 0 : index
    %70 = vector.load %arg11[%c0_34, %c0_35, %c0_36] : memref<1x1x32xf32, #tpu.memory_space<vmem>>, vector<1x1x32xf32>
    %71 = vector.shape_cast %70 : vector<1x1x32xf32> to vector<1x32xf32>
    %cst_37 = arith.constant dense<0.000000e+00> : vector<8xf32>
    %72 = vector.multi_reduction <add>, %67, %cst_37 [1] : vector<8x32xf32> to vector<8xf32>
    %73 = vector.shape_cast %72 : vector<8xf32> to vector<8x1xf32>
    %cst_38 = arith.constant 3.200000e+01 : f32
    %74 = vector.broadcast %cst_38 : f32 to vector<8x1xf32>
    %75 = arith.divf %73, %74 : vector<8x1xf32>
    %76 = vector.broadcast %75 : vector<8x1xf32> to vector<8x32xf32>
    %77 = arith.subf %67, %76 : vector<8x32xf32>
    %78 = arith.mulf %77, %77 : vector<8x32xf32>
    %cst_39 = arith.constant dense<0.000000e+00> : vector<8xf32>
    %79 = vector.multi_reduction <add>, %78, %cst_39 [1] : vector<8x32xf32> to vector<8xf32>
    %80 = vector.shape_cast %79 : vector<8xf32> to vector<8x1xf32>
    %cst_40 = arith.constant 3.200000e+01 : f32
    %81 = vector.broadcast %cst_40 : f32 to vector<8x1xf32>
    %82 = arith.divf %80, %81 : vector<8x1xf32>
    %cst_41 = arith.constant 9.99999996E-13 : f32
    %83 = vector.broadcast %cst_41 : f32 to vector<8x1xf32>
    %84 = arith.addf %82, %83 : vector<8x1xf32>
    %85 = math.rsqrt %84 : vector<8x1xf32>
    %86 = vector.broadcast %85 : vector<8x1xf32> to vector<8x32xf32>
    %87 = arith.mulf %77, %86 : vector<8x32xf32>
    %88 = vector.broadcast %69 : vector<1x32xf32> to vector<8x32xf32>
    %89 = arith.mulf %87, %88 : vector<8x32xf32>
    %90 = vector.broadcast %71 : vector<1x32xf32> to vector<8x32xf32>
    %91 = arith.addf %89, %90 : vector<8x32xf32>
    %92 = arith.truncf %91 : vector<8x32xf32> to vector<8x32xbf16>
    %c0_42 = arith.constant 0 : index
    %c0_43 = arith.constant 0 : index
    %c0_44 = arith.constant 0 : index
    %93 = vector.load %arg12[%c0_42, %c0_43, %c0_44] : memref<1x32x64xbf16, #tpu.memory_space<vmem>>, vector<1x32x64xbf16>
    %94 = vector.shape_cast %93 : vector<1x32x64xbf16> to vector<32x64xbf16>
    %cst_45 = arith.constant dense<0.000000e+00> : vector<8x64xf32>
    %95 = tpu.matmul %92, %94, %cst_45 {dimension_numbers = #tpu.dot_dimension_numbers<[1], [0], [0], [1], [0, 0, 1, 1], [], []>} : vector<8x32xbf16>, vector<32x64xbf16>, vector<8x64xf32> -> vector<8x64xf32>
    %c0_46 = arith.constant 0 : index
    %c0_47 = arith.constant 0 : index
    %c0_48 = arith.constant 0 : index
    %96 = vector.load %arg13[%c0_46, %c0_47, %c0_48] : memref<1x1x64xf32, #tpu.memory_space<vmem>>, vector<1x1x64xf32>
    %97 = vector.shape_cast %96 : vector<1x1x64xf32> to vector<1x64xf32>
    %98 = vector.broadcast %97 : vector<1x64xf32> to vector<8x64xf32>
    %99 = arith.addf %95, %98 : vector<8x64xf32>
    %cst_49 = arith.constant 5.000000e-01 : f32
    %100 = vector.broadcast %cst_49 : f32 to vector<8x64xf32>
    %101 = arith.mulf %100, %99 : vector<8x64xf32>
    %cst_50 = arith.constant 4.471500e-02 : f32
    %102 = vector.broadcast %cst_50 : f32 to vector<8x64xf32>
    %103 = arith.mulf %102, %99 : vector<8x64xf32>
    %104 = arith.mulf %103, %99 : vector<8x64xf32>
    %105 = arith.mulf %104, %99 : vector<8x64xf32>
    %106 = arith.addf %99, %105 : vector<8x64xf32>
    %cst_51 = arith.constant 0.797884583 : f32
    %107 = vector.broadcast %cst_51 : f32 to vector<8x64xf32>
    %108 = arith.mulf %107, %106 : vector<8x64xf32>
    %109 = math.tanh %108 : vector<8x64xf32>
    %cst_52 = arith.constant 1.000000e+00 : f32
    %110 = vector.broadcast %cst_52 : f32 to vector<8x64xf32>
    %111 = arith.addf %110, %109 : vector<8x64xf32>
    %112 = arith.mulf %101, %111 : vector<8x64xf32>
    %113 = arith.truncf %112 : vector<8x64xf32> to vector<8x64xbf16>
    %c0_53 = arith.constant 0 : index
    %c0_54 = arith.constant 0 : index
    %c0_55 = arith.constant 0 : index
    %114 = vector.load %arg14[%c0_53, %c0_54, %c0_55] : memref<1x64x32xbf16, #tpu.memory_space<vmem>>, vector<1x64x32xbf16>
    %115 = vector.shape_cast %114 : vector<1x64x32xbf16> to vector<64x32xbf16>
    %cst_56 = arith.constant dense<0.000000e+00> : vector<8x32xf32>
    %116 = tpu.matmul %113, %115, %cst_56 {dimension_numbers = #tpu.dot_dimension_numbers<[1], [0], [0], [1], [0, 0, 1, 1], [], []>} : vector<8x64xbf16>, vector<64x32xbf16>, vector<8x32xf32> -> vector<8x32xf32>
    %c0_57 = arith.constant 0 : index
    %c0_58 = arith.constant 0 : index
    %c0_59 = arith.constant 0 : index
    %117 = vector.load %arg15[%c0_57, %c0_58, %c0_59] : memref<1x1x32xf32, #tpu.memory_space<vmem>>, vector<1x1x32xf32>
    %118 = vector.shape_cast %117 : vector<1x1x32xf32> to vector<1x32xf32>
    %119 = vector.broadcast %118 : vector<1x32xf32> to vector<8x32xf32>
    %120 = arith.addf %116, %119 : vector<8x32xf32>
    %121 = arith.addf %91, %120 : vector<8x32xf32>
    %c0_60 = arith.constant 0 : index
    %c0_61 = arith.constant 0 : index
    %c0_62 = arith.constant 0 : index
    %122 = vector.load %arg16[%c0_60, %c0_61, %c0_62] : memref<1x1x32xf32, #tpu.memory_space<vmem>>, vector<1x1x32xf32>
    %123 = vector.shape_cast %122 : vector<1x1x32xf32> to vector<1x32xf32>
    %c0_63 = arith.constant 0 : index
    %c0_64 = arith.constant 0 : index
    %c0_65 = arith.constant 0 : index
    %124 = vector.load %arg17[%c0_63, %c0_64, %c0_65] : memref<1x1x32xf32, #tpu.memory_space<vmem>>, vector<1x1x32xf32>
    %125 = vector.shape_cast %124 : vector<1x1x32xf32> to vector<1x32xf32>
    %cst_66 = arith.constant dense<0.000000e+00> : vector<8xf32>
    %126 = vector.multi_reduction <add>, %121, %cst_66 [1] : vector<8x32xf32> to vector<8xf32>
    %127 = vector.shape_cast %126 : vector<8xf32> to vector<8x1xf32>
    %cst_67 = arith.constant 3.200000e+01 : f32
    %128 = vector.broadcast %cst_67 : f32 to vector<8x1xf32>
    %129 = arith.divf %127, %128 : vector<8x1xf32>
    %130 = vector.broadcast %129 : vector<8x1xf32> to vector<8x32xf32>
    %131 = arith.subf %121, %130 : vector<8x32xf32>
    %132 = arith.mulf %131, %131 : vector<8x32xf32>
    %cst_68 = arith.constant dense<0.000000e+00> : vector<8xf32>
    %133 = vector.multi_reduction <add>, %132, %cst_68 [1] : vector<8x32xf32> to vector<8xf32>
    %134 = vector.shape_cast %133 : vector<8xf32> to vector<8x1xf32>
    %cst_69 = arith.constant 3.200000e+01 : f32
    %135 = vector.broadcast %cst_69 : f32 to vector<8x1xf32>
    %136 = arith.divf %134, %135 : vector<8x1xf32>
    %cst_70 = arith.constant 9.99999996E-13 : f32
    %137 = vector.broadcast %cst_70 : f32 to vector<8x1xf32>
    %138 = arith.addf %136, %137 : vector<8x1xf32>
    %139 = math.rsqrt %138 : vector<8x1xf32>
    %140 = vector.broadcast %139 : vector<8x1xf32> to vector<8x32xf32>
    %141 = arith.mulf %131, %140 : vector<8x32xf32>
    %142 = vector.broadcast %123 : vector<1x32xf32> to vector<8x32xf32>
    %143 = arith.mulf %141, %142 : vector<8x32xf32>
    %144 = vector.broadcast %125 : vector<1x32xf32> to vector<8x32xf32>
    %145 = arith.addf %143, %144 : vector<8x32xf32>
    %c0_71 = arith.constant 0 : index
    %c0_72 = arith.constant 0 : index
    %146 = vector.load %arg23[%c0_71, %c0_72] : memref<8x32xf32, #tpu.memory_space<vmem>>, vector<8x32xf32>
    tpu.vector_store %arg23[%c0_71, %c0_72], %145 {strides = array<i32>} : memref<8x32xf32, #tpu.memory_space<vmem>>, vector<8x32xf32>,
    %c1_i32 = arith.constant 1 : i32
    %147 = arith.cmpi eq, %arg1, %c1_i32 : i32
    %148 = arith.extui %147 : i1 to i32
    %c0_i32_73 = arith.constant 0 : i32
    %149 = arith.cmpi ne, %148, %c0_i32_73 : i32
    scf.if %149 {
      %150 = vector.extract_strided_slice %145 {offsets = [0, 0], sizes = [1, 32], strides = [1, 1]} : vector<8x32xf32> to vector<1x32xf32>
      %151 = arith.truncf %150 : vector<1x32xf32> to vector<1x32xbf16>
      %c0_74 = arith.constant 0 : index
      %c0_75 = arith.constant 0 : index
      %152 = vector.load %arg18[%c0_74, %c0_75] : memref<32x32xbf16, #tpu.memory_space<vmem>>, vector<32x32xbf16>
      %cst_76 = arith.constant dense<0.000000e+00> : vector<1x32xf32>
      %153 = tpu.matmul %151, %152, %cst_76 {dimension_numbers = #tpu.dot_dimension_numbers<[1], [0], [0], [1], [0, 0, 1, 1], [], []>} : vector<1x32xbf16>, vector<32x32xbf16>, vector<1x32xf32> -> vector<1x32xf32>
      %c0_77 = arith.constant 0 : index
      %c0_78 = arith.constant 0 : index
      %154 = vector.load %arg19[%c0_77, %c0_78] : memref<1x32xf32, #tpu.memory_space<vmem>>, vector<1x32xf32>
      %155 = arith.addf %153, %154 : vector<1x32xf32>
      %156 = math.tanh %155 : vector<1x32xf32>
      %157 = arith.truncf %156 : vector<1x32xf32> to vector<1x32xbf16>
      %c0_79 = arith.constant 0 : index
      %c0_80 = arith.constant 0 : index
      %158 = vector.load %arg20[%c0_79, %c0_80] : memref<32x128xbf16, #tpu.memory_space<vmem>>, vector<32x128xbf16>
      %cst_81 = arith.constant dense<0.000000e+00> : vector<1x128xf32>
      %159 = tpu.matmul %157, %158, %cst_81 {dimension_numbers = #tpu.dot_dimension_numbers<[1], [0], [0], [1], [0, 0, 1, 1], [], []>} : vector<1x32xbf16>, vector<32x128xbf16>, vector<1x128xf32> -> vector<1x128xf32>
      %c0_82 = arith.constant 0 : index
      %c0_83 = arith.constant 0 : index
      %160 = vector.load %arg21[%c0_82, %c0_83] : memref<1x128xf32, #tpu.memory_space<vmem>>, vector<1x128xf32>
      %161 = arith.addf %159, %160 : vector<1x128xf32>
      %c0_84 = arith.constant 0 : index
      %c0_85 = arith.constant 0 : index
      %c0_86 = arith.constant 0 : index
      %162 = vector.load %arg22[%c0_84, %c0_85, %c0_86] : memref<1x1x128xf32, #tpu.memory_space<vmem>>, vector<1x1x128xf32>
      %163 = vector.shape_cast %162 : vector<1x1x128xf32> to vector<1x128xf32>
      %164 = vector.shape_cast %161 : vector<1x128xf32> to vector<1x1x128xf32>
      tpu.vector_store %arg22[%c0_84, %c0_85, %c0_86], %164 {strides = array<i32>} : memref<1x1x128xf32, #tpu.memory_space<vmem>>, vector<1x1x128xf32>,
    } else {
    }
    return
  }
  func.func @transform_0(%arg0: i32, %arg1: i32) -> (i32, i32, i32) {
    %c0_i32 = arith.constant 0 : i32
    %c0_i32_0 = arith.constant 0 : i32
    %c0_i32_1 = arith.constant 0 : i32
    return %arg0, %c0_i32, %c0_i32_0 : i32, i32, i32
  }
  func.func @transform_1(%arg0: i32, %arg1: i32) -> (i32, i32, i32) {
    %c0_i32 = arith.constant 0 : i32
    %c0_i32_0 = arith.constant 0 : i32
    %c0_i32_1 = arith.constant 0 : i32
    return %arg0, %c0_i32, %c0_i32_0 : i32, i32, i32
  }
  func.func @transform_2(%arg0: i32, %arg1: i32) -> (i32, i32) {
    %c0_i32 = arith.constant 0 : i32
    %c0_i32_0 = arith.constant 0 : i32
    %c0_i32_1 = arith.constant 0 : i32
    return %c0_i32, %c0_i32_0 : i32, i32
  }
  func.func @transform_3(%arg0: i32, %arg1: i32) -> (i32, i32) {
    %c0_i32 = arith.constant 0 : i32
    %c0_i32_0 = arith.constant 0 : i32
    %c0_i32_1 = arith.constant 0 : i32
    return %c0_i32, %c0_i32_0 : i32, i32
  }
  func.func @transform_4(%arg0: i32, %arg1: i32) -> (i32, i32, i32) {
    %c0_i32 = arith.constant 0 : i32
    %c0_i32_0 = arith.constant 0 : i32
    %c0_i32_1 = arith.constant 0 : i32
    return %arg1, %c0_i32, %c0_i32_0 : i32, i32, i32
  }
  func.func @transform_5(%arg0: i32, %arg1: i32) -> (i32, i32, i32) {
    %c0_i32 = arith.constant 0 : i32
    %c0_i32_0 = arith.constant 0 : i32
    %c0_i32_1 = arith.constant 0 : i32
    return %arg1, %c0_i32, %c0_i32_0 : i32, i32, i32
  }
  func.func @transform_6(%arg0: i32, %arg1: i32) -> (i32, i32, i32) {
    %c0_i32 = arith.constant 0 : i32
    %c0_i32_0 = arith.constant 0 : i32
    %c0_i32_1 = arith.constant 0 : i32
    return %arg1, %c0_i32, %c0_i32_0 : i32, i32, i32
  }
  func.func @transform_7(%arg0: i32, %arg1: i32) -> (i32, i32, i32) {
    %c0_i32 = arith.constant 0 : i32
    %c0_i32_0 = arith.constant 0 : i32
    %c0_i32_1 = arith.constant 0 : i32
    return %arg1, %c0_i32, %c0_i32_0 : i32, i32, i32
  }
  func.func @transform_8(%arg0: i32, %arg1: i32) -> (i32, i32, i32) {
    %c0_i32 = arith.constant 0 : i32
    %c0_i32_0 = arith.constant 0 : i32
    %c0_i32_1 = arith.constant 0 : i32
    return %arg1, %c0_i32, %c0_i32_0 : i32, i32, i32
  }
  func.func @transform_9(%arg0: i32, %arg1: i32) -> (i32, i32, i32) {
    %c0_i32 = arith.constant 0 : i32
    %c0_i32_0 = arith.constant 0 : i32
    %c0_i32_1 = arith.constant 0 : i32
    return %arg1, %c0_i32, %c0_i32_0 : i32, i32, i32
  }
  func.func @transform_10(%arg0: i32, %arg1: i32) -> (i32, i32, i32) {
    %c0_i32 = arith.constant 0 : i32
    %c0_i32_0 = arith.constant 0 : i32
    %c0_i32_1 = arith.constant 0 : i32
    return %arg1, %c0_i32, %c0_i32_0 : i32, i32, i32
  }
  func.func @transform_11(%arg0: i32, %arg1: i32) -> (i32, i32, i32) {
    %c0_i32 = arith.constant 0 : i32
    %c0_i32_0 = arith.constant 0 : i32
    %c0_i32_1 = arith.constant 0 : i32
    return %arg1, %c0_i32, %c0_i32_0 : i32, i32, i32
  }
  func.func @transform_12(%arg0: i32, %arg1: i32) -> (i32, i32, i32) {
    %c0_i32 = arith.constant 0 : i32
    %c0_i32_0 = arith.constant 0 : i32
    %c0_i32_1 = arith.constant 0 : i32
    return %arg1, %c0_i32, %c0_i32_0 : i32, i32, i32
  }
  func.func @transform_13(%arg0: i32, %arg1: i32) -> (i32, i32, i32) {
    %c0_i32 = arith.constant 0 : i32
    %c0_i32_0 = arith.constant 0 : i32
    %c0_i32_1 = arith.constant 0 : i32
    return %arg1, %c0_i32, %c0_i32_0 : i32, i32, i32
  }
  func.func @transform_14(%arg0: i32, %arg1: i32) -> (i32, i32, i32) {
    %c0_i32 = arith.constant 0 : i32
    %c0_i32_0 = arith.constant 0 : i32
    %c0_i32_1 = arith.constant 0 : i32
    return %arg1, %c0_i32, %c0_i32_0 : i32, i32, i32
  }
  func.func @transform_15(%arg0: i32, %arg1: i32) -> (i32, i32, i32) {
    %c0_i32 = arith.constant 0 : i32
    %c0_i32_0 = arith.constant 0 : i32
    %c0_i32_1 = arith.constant 0 : i32
    return %arg1, %c0_i32, %c0_i32_0 : i32, i32, i32
  }
  func.func @transform_16(%arg0: i32, %arg1: i32) -> (i32, i32) {
    %c0_i32 = arith.constant 0 : i32
    %c0_i32_0 = arith.constant 0 : i32
    %c0_i32_1 = arith.constant 0 : i32
    return %c0_i32, %c0_i32_0 : i32, i32
  }
  func.func @transform_17(%arg0: i32, %arg1: i32) -> (i32, i32) {
    %c0_i32 = arith.constant 0 : i32
    %c0_i32_0 = arith.constant 0 : i32
    %c0_i32_1 = arith.constant 0 : i32
    return %c0_i32, %c0_i32_0 : i32, i32
  }
  func.func @transform_18(%arg0: i32, %arg1: i32) -> (i32, i32) {
    %c0_i32 = arith.constant 0 : i32
    %c0_i32_0 = arith.constant 0 : i32
    %c0_i32_1 = arith.constant 0 : i32
    return %c0_i32, %c0_i32_0 : i32, i32
  }
  func.func @transform_19(%arg0: i32, %arg1: i32) -> (i32, i32) {
    %c0_i32 = arith.constant 0 : i32
    %c0_i32_0 = arith.constant 0 : i32
    %c0_i32_1 = arith.constant 0 : i32
    return %c0_i32, %c0_i32_0 : i32, i32
  }
  func.func @transform_20(%arg0: i32, %arg1: i32) -> (i32, i32, i32) {
    %c0_i32 = arith.constant 0 : i32
    %c0_i32_0 = arith.constant 0 : i32
    %c0_i32_1 = arith.constant 0 : i32
    return %arg0, %c0_i32, %c0_i32_0 : i32, i32, i32
  }
}

</mosaic_0001>

<llo_original>
// kernel: model_forward.1
$region0: #{model_forward.1}
  #allocation0 [shape = 'u32[]', space=smem, size = 0x4, offset = 0x4, fixed_abs, tag = 'smem constant byte address 0x4 - core index']
  #allocation1 [shape = 'u32[144,128]{1,0:T(1,128)}', space=vmem, size = 0x12000, scoped, tag = 'internal scratch']
  #allocation2 [shape = 'f32[8,32]{1,0:T(8,128)}', space=vmem, size = 0x1000, scoped, tag = 'scratch operand']
  #allocation3 [shape = 'f32[8,32]{1,0:T(8,128)}', space=vmem, size = 0x1000, scoped, tag = 'scratch operand']
  %s0 = inlined_call_operand.vmem [shape: f32[2,8,32], index: 0, kind: input, shape index: {}]
  %s1 = inlined_call_operand.vmem [shape: f32[2,1,8], index: 1, kind: input, shape index: {}]
  %s2 = inlined_call_operand.vmem [shape: f32[1,32], index: 2, kind: input, shape index: {}]
  %s3 = inlined_call_operand.vmem [shape: f32[1,32], index: 3, kind: input, shape index: {}]
  %s4 = inlined_call_operand.vmem [shape: bf16[2,32,96], index: 4, kind: input, shape index: {}]
  %s5 = inlined_call_operand.vmem [shape: f32[2,1,96], index: 5, kind: input, shape index: {}]
  %s6 = inlined_call_operand.vmem [shape: bf16[2,32,32], index: 6, kind: input, shape index: {}]
  %s7 = inlined_call_operand.vmem [shape: f32[2,1,32], index: 7, kind: input, shape index: {}]
  %s8 = inlined_call_operand.vmem [shape: f32[2,1,32], index: 8, kind: input, shape index: {}]
  %s9 = inlined_call_operand.vmem [shape: f32[2,1,32], index: 9, kind: input, shape index: {}]
  %s10 = inlined_call_operand.vmem [shape: bf16[2,32,64], index: 10, kind: input, shape index: {}]
  %s11 = inlined_call_operand.vmem [shape: f32[2,1,64], index: 11, kind: input, shape index: {}]
  %s12 = inlined_call_operand.vmem [shape: bf16[2,64,32], index: 12, kind: input, shape index: {}]
  %s13 = inlined_call_operand.vmem [shape: f32[2,1,32], index: 13, kind: input, shape index: {}]
  %s14 = inlined_call_operand.vmem [shape: f32[2,1,32], index: 14, kind: input, shape index: {}]
  %s15 = inlined_call_operand.vmem [shape: f32[2,1,32], index: 15, kind: input, shape index: {}]
  %s16 = inlined_call_operand.vmem [shape: bf16[32,32], index: 16, kind: input, shape index: {}]
  %s17 = inlined_call_operand.vmem [shape: f32[1,32], index: 17, kind: input, shape index: {}]
  %s18 = inlined_call_operand.vmem [shape: bf16[32,128], index: 18, kind: input, shape index: {}]
  %s19 = inlined_call_operand.vmem [shape: f32[1,128], index: 19, kind: input, shape index: {}]
  %s20 = inlined_call_operand.hbm [shape: f32[2,1,128], index: 20, kind: output, shape index: {}]
  %s21 = sld [smem:[#allocation0]]
  $region121: #{model_forward.1} parent=0
    _
  %s23 = ssub.s32 1, %s21
  %s24 = scalar_select 0, %s23, %s21
  $region1: #{model_forward.1} parent=0
    #allocation4 [shape = 'u8[1024]{0}', space=vmem, size = 0x400, scoped, tag = 'output window, operand 0']
    #allocation5 [shape = 's32[2]{0}', space=sflag, size = 0x8, scoped, tag = 'scoped memory for model_forward.1']
    %25 = vsyncpa [#allocation5], 0
    %s26 = scalar_lea.sflag [#allocation5], 1
    %27 = vsyncpa %s26, 0
    loop: start=0, step=1, limit=6
    $region2: #{model_forward.1} parent=1 // loop_pre_header
      _
    $region3: #{model_forward.1} parent=1 // loop_header
      %s29 = sphi 0, %s33
      %p30 = scmp.ge.s32.totalorder %s29, 6
      %s36 = sphi 0, %s48
      %s37 = sphi 0, %s44
      %s38 = sphi 0, %s36
      %s39 = sphi 0, %s37
      %s40 = sphi 0, %s38
      %s41 = sphi 0, %s39
      %s51 = sphi 0, %s53
      %s54 = sphi 0, %s51
      %s55 = sphi 0, %s54
      %s71 = sphi 0, %s55
      %s77 = sphi 0, %s79
      %s80 = sphi 0, %s77
      %s81 = sphi 0, %s80
      %s97 = sphi 0, %s81
      %s101 = sphi 0, %s101
      %s103 = sphi 0, %s101
      %s104 = sphi 0, %s103
      %s118 = sphi 0, %s104
      %s122 = sphi 0, %s122
      %s124 = sphi 0, %s122
      %s125 = sphi 0, %s124
      %s139 = sphi 0, %s125
      %s145 = sphi 0, %s147
      %s148 = sphi 0, %s145
      %s149 = sphi 0, %s148
      %s165 = sphi 0, %s149
      %s171 = sphi 0, %s173
      %s174 = sphi 0, %s171
      %s175 = sphi 0, %s174
      %s191 = sphi 0, %s175
      %s197 = sphi 0, %s199
      %s200 = sphi 0, %s197
      %s201 = sphi 0, %s200
      %s217 = sphi 0, %s201
      %s223 = sphi 0, %s225
      %s226 = sphi 0, %s223
      %s227 = sphi 0, %s226
      %s243 = sphi 0, %s227
      %s249 = sphi 0, %s251
      %s252 = sphi 0, %s249
      %s253 = sphi 0, %s252
      %s269 = sphi 0, %s253
      %s275 = sphi 0, %s277
      %s278 = sphi 0, %s275
      %s279 = sphi 0, %s278
      %s295 = sphi 0, %s279
      %s301 = sphi 0, %s303
      %s304 = sphi 0, %s301
      %s305 = sphi 0, %s304
      %s321 = sphi 0, %s305
      %s327 = sphi 0, %s329
      %s330 = sphi 0, %s327
      %s331 = sphi 0, %s330
      %s347 = sphi 0, %s331
      %s353 = sphi 0, %s355
      %s356 = sphi 0, %s353
      %s357 = sphi 0, %s356
      %s373 = sphi 0, %s357
      %s379 = sphi 0, %s381
      %s382 = sphi 0, %s379
      %s383 = sphi 0, %s382
      %s399 = sphi 0, %s383
      %s405 = sphi 0, %s407
      %s408 = sphi 0, %s405
      %s409 = sphi 0, %s408
      %s425 = sphi 0, %s409
      %s431 = sphi 0, %s433
      %s434 = sphi 0, %s431
      %s435 = sphi 0, %s434
      %s451 = sphi 0, %s435
      %s455 = sphi 0, %s455
      %s457 = sphi 0, %s455
      %s458 = sphi 0, %s457
      %s472 = sphi 0, %s458
      %s476 = sphi 0, %s476
      %s478 = sphi 0, %s476
      %s479 = sphi 0, %s478
      %s493 = sphi 0, %s479
      %s497 = sphi 0, %s497
      %s499 = sphi 0, %s497
      %s500 = sphi 0, %s499
      %s514 = sphi 0, %s500
      %s518 = sphi 0, %s518
      %s520 = sphi 0, %s518
      %s521 = sphi 0, %s520
      %s535 = sphi 0, %s521
      %s541 = sphi 0, %s543
      %s544 = sphi 0, %s541
      %s545 = sphi 0, %s544
      %s561 = sphi 0, %s545
    $region4: #{model_forward.1} parent=1 // loop_header_branch
      %32 = sbr.rel (%p30) target = $region8
    $region5: #{model_forward.1} parent=1 // loop_body
      %s34 = ssub.s32 %s29, 1
      %s35 = ssub.s32 %s29, 2
      %s42 = sadd.s32 1, %s37
      %p43 = scmp.ge.s32.totalorder %s42, 2
      %s44 = scalar_select %p43, 0, %s42
      %s45 = sadd.s32 1, %s36
      %s46 = scalar_select %p43, %s45, %s36
      %p47 = scmp.ge.s32.totalorder %s46, 2
      %s48 = scalar_select %p47, 0, %s46
      %s49 = ssub.s32 %s36, %s48
      %p50 = scmp.eq.s32.totalorder %s49, 0
      %s52 = sadd.s32 %s51, 1
      %s53 = scalar_select %p50, %s51, %s52
      %p56 = pneg %p50
      %p57 = scmp.eq.s32.totalorder %s29, 3
      %p58 = por %p56, %p57
      %p59 = scmp.ne.s32.totalorder %s51, %s54
      %p60 = scmp.eq.s32.totalorder %s29, 0
      %p61 = por %p59, %p60
      %p62 = scmp.ne.s32.totalorder %s51, %s54
      %p63 = scmp.eq.s32.totalorder %s34, 3
      %p64 = por %p62, %p63
      %p65 = scmp.ne.s32.totalorder %s54, %s55
      %p66 = scmp.eq.s32.totalorder %s34, 0
      %p67 = por %p65, %p66
      %p68 = scmp.ne.s32.totalorder %s54, %s55
      %p69 = scmp.eq.s32.totalorder %s35, 3
      %p70 = por %p68, %p69
      %p72 = scmp.ne.s32.totalorder %s55, %s71
      %p73 = scmp.eq.s32.totalorder %s35, 0
      %p74 = por %p72, %p73
      %s75 = ssub.s32 %s36, %s48
      %p76 = scmp.eq.s32.totalorder %s75, 0
      %s78 = sadd.s32 %s77, 1
      %s79 = scalar_select %p76, %s77, %s78
      %p82 = pneg %p76
      %p83 = scmp.eq.s32.totalorder %s29, 3
      %p84 = por %p82, %p83
      %p85 = scmp.ne.s32.totalorder %s77, %s80
      %p86 = scmp.eq.s32.totalorder %s29, 0
      %p87 = por %p85, %p86
      %p88 = scmp.ne.s32.totalorder %s77, %s80
      %p89 = scmp.eq.s32.totalorder %s34, 3
      %p90 = por %p88, %p89
      %p91 = scmp.ne.s32.totalorder %s80, %s81
      %p92 = scmp.eq.s32.totalorder %s34, 0
      %p93 = por %p91, %p92
      %p94 = scmp.ne.s32.totalorder %s80, %s81
      %p95 = scmp.eq.s32.totalorder %s35, 3
      %p96 = por %p94, %p95
      %p98 = scmp.ne.s32.totalorder %s81, %s97
      %p99 = scmp.eq.s32.totalorder %s35, 0
      %p100 = por %p98, %p99
      %s102 = sadd.s32 %s101, 1
      %p105 = scmp.eq.s32.totalorder %s29, 3
      %p106 = scmp.ne.s32.totalorder %s101, %s103
      %p107 = scmp.eq.s32.totalorder %s29, 0
      %p108 = por %p106, %p107
      %p109 = scmp.ne.s32.totalorder %s101, %s103
      %p110 = scmp.eq.s32.totalorder %s34, 3
      %p111 = por %p109, %p110
      %p112 = scmp.ne.s32.totalorder %s103, %s104
      %p113 = scmp.eq.s32.totalorder %s34, 0
      %p114 = por %p112, %p113
      %p115 = scmp.ne.s32.totalorder %s103, %s104
      %p116 = scmp.eq.s32.totalorder %s35, 3
      %p117 = por %p115, %p116
      %p119 = scmp.ne.s32.totalorder %s104, %s118
      %p120 = scmp.eq.s32.totalorder %s35, 0
      %p121 = por %p119, %p120
      %s123 = sadd.s32 %s122, 1
      %p126 = scmp.eq.s32.totalorder %s29, 3
      %p127 = scmp.ne.s32.totalorder %s122, %s124
      %p128 = scmp.eq.s32.totalorder %s29, 0
      %p129 = por %p127, %p128
      %p130 = scmp.ne.s32.totalorder %s122, %s124
      %p131 = scmp.eq.s32.totalorder %s34, 3
      %p132 = por %p130, %p131
      %p133 = scmp.ne.s32.totalorder %s124, %s125
      %p134 = scmp.eq.s32.totalorder %s34, 0
      %p135 = por %p133, %p134
      %p136 = scmp.ne.s32.totalorder %s124, %s125
      %p137 = scmp.eq.s32.totalorder %s35, 3
      %p138 = por %p136, %p137
      %p140 = scmp.ne.s32.totalorder %s125, %s139
      %p141 = scmp.eq.s32.totalorder %s35, 0
      %p142 = por %p140, %p141
      %s143 = ssub.s32 %s37, %s44
      %p144 = scmp.eq.s32.totalorder %s143, 0
      %s146 = sadd.s32 %s145, 1
      %s147 = scalar_select %p144, %s145, %s146
      %p150 = pneg %p144
      %p151 = scmp.eq.s32.totalorder %s29, 3
      %p152 = por %p150, %p151
      %p153 = scmp.ne.s32.totalorder %s145, %s148
      %p154 = scmp.eq.s32.totalorder %s29, 0
      %p155 = por %p153, %p154
      %p156 = scmp.ne.s32.totalorder %s145, %s148
      %p157 = scmp.eq.s32.totalorder %s34, 3
      %p158 = por %p156, %p157
      %p159 = scmp.ne.s32.totalorder %s148, %s149
      %p160 = scmp.eq.s32.totalorder %s34, 0
      %p161 = por %p159, %p160
      %p162 = scmp.ne.s32.totalorder %s148, %s149
      %p163 = scmp.eq.s32.totalorder %s35, 3
      %p164 = por %p162, %p163
      %p166 = scmp.ne.s32.totalorder %s149, %s165
      %p167 = scmp.eq.s32.totalorder %s35, 0
      %p168 = por %p166, %p167
      %s169 = ssub.s32 %s37, %s44
      %p170 = scmp.eq.s32.totalorder %s169, 0
      %s172 = sadd.s32 %s171, 1
      %s173 = scalar_select %p170, %s171, %s172
      %p176 = pneg %p170
      %p177 = scmp.eq.s32.totalorder %s29, 3
      %p178 = por %p176, %p177
      %p179 = scmp.ne.s32.totalorder %s171, %s174
      %p180 = scmp.eq.s32.totalorder %s29, 0
      %p181 = por %p179, %p180
      %p182 = scmp.ne.s32.totalorder %s171, %s174
      %p183 = scmp.eq.s32.totalorder %s34, 3
      %p184 = por %p182, %p183
      %p185 = scmp.ne.s32.totalorder %s174, %s175
      %p186 = scmp.eq.s32.totalorder %s34, 0
      %p187 = por %p185, %p186
      %p188 = scmp.ne.s32.totalorder %s174, %s175
      %p189 = scmp.eq.s32.totalorder %s35, 3
      %p190 = por %p188, %p189
      %p192 = scmp.ne.s32.totalorder %s175, %s191
      %p193 = scmp.eq.s32.totalorder %s35, 0
      %p194 = por %p192, %p193
      %s195 = ssub.s32 %s37, %s44
      %p196 = scmp.eq.s32.totalorder %s195, 0
      %s198 = sadd.s32 %s197, 1
      %s199 = scalar_select %p196, %s197, %s198
      %p202 = pneg %p196
      %p203 = scmp.eq.s32.totalorder %s29, 3
      %p204 = por %p202, %p203
      %p205 = scmp.ne.s32.totalorder %s197, %s200
      %p206 = scmp.eq.s32.totalorder %s29, 0
      %p207 = por %p205, %p206
      %p208 = scmp.ne.s32.totalorder %s197, %s200
      %p209 = scmp.eq.s32.totalorder %s34, 3
      %p210 = por %p208, %p209
      %p211 = scmp.ne.s32.totalorder %s200, %s201
      %p212 = scmp.eq.s32.totalorder %s34, 0
      %p213 = por %p211, %p212
      %p214 = scmp.ne.s32.totalorder %s200, %s201
      %p215 = scmp.eq.s32.totalorder %s35, 3
      %p216 = por %p214, %p215
      %p218 = scmp.ne.s32.totalorder %s201, %s217
      %p219 = scmp.eq.s32.totalorder %s35, 0
      %p220 = por %p218, %p219
      %s221 = ssub.s32 %s37, %s44
      %p222 = scmp.eq.s32.totalorder %s221, 0
      %s224 = sadd.s32 %s223, 1
      %s225 = scalar_select %p222, %s223, %s224
      %p228 = pneg %p222
      %p229 = scmp.eq.s32.totalorder %s29, 3
      %p230 = por %p228, %p229
      %p231 = scmp.ne.s32.totalorder %s223, %s226
      %p232 = scmp.eq.s32.totalorder %s29, 0
      %p233 = por %p231, %p232
      %p234 = scmp.ne.s32.totalorder %s223, %s226
      %p235 = scmp.eq.s32.totalorder %s34, 3
      %p236 = por %p234, %p235
      %p237 = scmp.ne.s32.totalorder %s226, %s227
      %p238 = scmp.eq.s32.totalorder %s34, 0
      %p239 = por %p237, %p238
      %p240 = scmp.ne.s32.totalorder %s226, %s227
      %p241 = scmp.eq.s32.totalorder %s35, 3
      %p242 = por %p240, %p241
      %p244 = scmp.ne.s32.totalorder %s227, %s243
      %p245 = scmp.eq.s32.totalorder %s35, 0
      %p246 = por %p244, %p245
      %s247 = ssub.s32 %s37, %s44
      %p248 = scmp.eq.s32.totalorder %s247, 0
      %s250 = sadd.s32 %s249, 1
      %s251 = scalar_select %p248, %s249, %s250
      %p254 = pneg %p248
      %p255 = scmp.eq.s32.totalorder %s29, 3
      %p256 = por %p254, %p255
      %p257 = scmp.ne.s32.totalorder %s249, %s252
      %p258 = scmp.eq.s32.totalorder %s29, 0
      %p259 = por %p257, %p258
      %p260 = scmp.ne.s32.totalorder %s249, %s252
      %p261 = scmp.eq.s32.totalorder %s34, 3
      %p262 = por %p260, %p261
      %p263 = scmp.ne.s32.totalorder %s252, %s253
      %p264 = scmp.eq.s32.totalorder %s34, 0
      %p265 = por %p263, %p264
      %p266 = scmp.ne.s32.totalorder %s252, %s253
      %p267 = scmp.eq.s32.totalorder %s35, 3
      %p268 = por %p266, %p267
      %p270 = scmp.ne.s32.totalorder %s253, %s269
      %p271 = scmp.eq.s32.totalorder %s35, 0
      %p272 = por %p270, %p271
      %s273 = ssub.s32 %s37, %s44
      %p274 = scmp.eq.s32.totalorder %s273, 0
      %s276 = sadd.s32 %s275, 1
      %s277 = scalar_select %p274, %s275, %s276
      %p280 = pneg %p274
      %p281 = scmp.eq.s32.totalorder %s29, 3
      %p282 = por %p280, %p281
      %p283 = scmp.ne.s32.totalorder %s275, %s278
      %p284 = scmp.eq.s32.totalorder %s29, 0
      %p285 = por %p283, %p284
      %p286 = scmp.ne.s32.totalorder %s275, %s278
      %p287 = scmp.eq.s32.totalorder %s34, 3
      %p288 = por %p286, %p287
      %p289 = scmp.ne.s32.totalorder %s278, %s279
      %p290 = scmp.eq.s32.totalorder %s34, 0
      %p291 = por %p289, %p290
      %p292 = scmp.ne.s32.totalorder %s278, %s279
      %p293 = scmp.eq.s32.totalorder %s35, 3
      %p294 = por %p292, %p293
      %p296 = scmp.ne.s32.totalorder %s279, %s295
      %p297 = scmp.eq.s32.totalorder %s35, 0
      %p298 = por %p296, %p297
      %s299 = ssub.s32 %s37, %s44
      %p300 = scmp.eq.s32.totalorder %s299, 0
      %s302 = sadd.s32 %s301, 1
      %s303 = scalar_select %p300, %s301, %s302
      %p306 = pneg %p300
      %p307 = scmp.eq.s32.totalorder %s29, 3
      %p308 = por %p306, %p307
      %p309 = scmp.ne.s32.totalorder %s301, %s304
      %p310 = scmp.eq.s32.totalorder %s29, 0
      %p311 = por %p309, %p310
      %p312 = scmp.ne.s32.totalorder %s301, %s304
      %p313 = scmp.eq.s32.totalorder %s34, 3
      %p314 = por %p312, %p313
      %p315 = scmp.ne.s32.totalorder %s304, %s305
      %p316 = scmp.eq.s32.totalorder %s34, 0
      %p317 = por %p315, %p316
      %p318 = scmp.ne.s32.totalorder %s304, %s305
      %p319 = scmp.eq.s32.totalorder %s35, 3
      %p320 = por %p318, %p319
      %p322 = scmp.ne.s32.totalorder %s305, %s321
      %p323 = scmp.eq.s32.totalorder %s35, 0
      %p324 = por %p322, %p323
      %s325 = ssub.s32 %s37, %s44
      %p326 = scmp.eq.s32.totalorder %s325, 0
      %s328 = sadd.s32 %s327, 1
      %s329 = scalar_select %p326, %s327, %s328
      %p332 = pneg %p326
      %p333 = scmp.eq.s32.totalorder %s29, 3
      %p334 = por %p332, %p333
      %p335 = scmp.ne.s32.totalorder %s327, %s330
      %p336 = scmp.eq.s32.totalorder %s29, 0
      %p337 = por %p335, %p336
      %p338 = scmp.ne.s32.totalorder %s327, %s330
      %p339 = scmp.eq.s32.totalorder %s34, 3
      %p340 = por %p338, %p339
      %p341 = scmp.ne.s32.totalorder %s330, %s331
      %p342 = scmp.eq.s32.totalorder %s34, 0
      %p343 = por %p341, %p342
      %p344 = scmp.ne.s32.totalorder %s330, %s331
      %p345 = scmp.eq.s32.totalorder %s35, 3
      %p346 = por %p344, %p345
      %p348 = scmp.ne.s32.totalorder %s331, %s347
      %p349 = scmp.eq.s32.totalorder %s35, 0
      %p350 = por %p348, %p349
      %s351 = ssub.s32 %s37, %s44
      %p352 = scmp.eq.s32.totalorder %s351, 0
      %s354 = sadd.s32 %s353, 1
      %s355 = scalar_select %p352, %s353, %s354
      %p358 = pneg %p352
      %p359 = scmp.eq.s32.totalorder %s29, 3
      %p360 = por %p358, %p359
      %p361 = scmp.ne.s32.totalorder %s353, %s356
      %p362 = scmp.eq.s32.totalorder %s29, 0
      %p363 = por %p361, %p362
      %p364 = scmp.ne.s32.totalorder %s353, %s356
      %p365 = scmp.eq.s32.totalorder %s34, 3
      %p366 = por %p364, %p365
      %p367 = scmp.ne.s32.totalorder %s356, %s357
      %p368 = scmp.eq.s32.totalorder %s34, 0
      %p369 = por %p367, %p368
      %p370 = scmp.ne.s32.totalorder %s356, %s357
      %p371 = scmp.eq.s32.totalorder %s35, 3
      %p372 = por %p370, %p371
      %p374 = scmp.ne.s32.totalorder %s357, %s373
      %p375 = scmp.eq.s32.totalorder %s35, 0
      %p376 = por %p374, %p375
      %s377 = ssub.s32 %s37, %s44
      %p378 = scmp.eq.s32.totalorder %s377, 0
      %s380 = sadd.s32 %s379, 1
      %s381 = scalar_select %p378, %s379, %s380
      %p384 = pneg %p378
      %p385 = scmp.eq.s32.totalorder %s29, 3
      %p386 = por %p384, %p385
      %p387 = scmp.ne.s32.totalorder %s379, %s382
      %p388 = scmp.eq.s32.totalorder %s29, 0
      %p389 = por %p387, %p388
      %p390 = scmp.ne.s32.totalorder %s379, %s382
      %p391 = scmp.eq.s32.totalorder %s34, 3
      %p392 = por %p390, %p391
      %p393 = scmp.ne.s32.totalorder %s382, %s383
      %p394 = scmp.eq.s32.totalorder %s34, 0
      %p395 = por %p393, %p394
      %p396 = scmp.ne.s32.totalorder %s382, %s383
      %p397 = scmp.eq.s32.totalorder %s35, 3
      %p398 = por %p396, %p397
      %p400 = scmp.ne.s32.totalorder %s383, %s399
      %p401 = scmp.eq.s32.totalorder %s35, 0
      %p402 = por %p400, %p401
      %s403 = ssub.s32 %s37, %s44
      %p404 = scmp.eq.s32.totalorder %s403, 0
      %s406 = sadd.s32 %s405, 1
      %s407 = scalar_select %p404, %s405, %s406
      %p410 = pneg %p404
      %p411 = scmp.eq.s32.totalorder %s29, 3
      %p412 = por %p410, %p411
      %p413 = scmp.ne.s32.totalorder %s405, %s408
      %p414 = scmp.eq.s32.totalorder %s29, 0
      %p415 = por %p413, %p414
      %p416 = scmp.ne.s32.totalorder %s405, %s408
      %p417 = scmp.eq.s32.totalorder %s34, 3
      %p418 = por %p416, %p417
      %p419 = scmp.ne.s32.totalorder %s408, %s409
      %p420 = scmp.eq.s32.totalorder %s34, 0
      %p421 = por %p419, %p420
      %p422 = scmp.ne.s32.totalorder %s408, %s409
      %p423 = scmp.eq.s32.totalorder %s35, 3
      %p424 = por %p422, %p423
      %p426 = scmp.ne.s32.totalorder %s409, %s425
      %p427 = scmp.eq.s32.totalorder %s35, 0
      %p428 = por %p426, %p427
      %s429 = ssub.s32 %s37, %s44
      %p430 = scmp.eq.s32.totalorder %s429, 0
      %s432 = sadd.s32 %s431, 1
      %s433 = scalar_select %p430, %s431, %s432
      %p436 = pneg %p430
      %p437 = scmp.eq.s32.totalorder %s29, 3
      %p438 = por %p436, %p437
      %p439 = scmp.ne.s32.totalorder %s431, %s434
      %p440 = scmp.eq.s32.totalorder %s29, 0
      %p441 = por %p439, %p440
      %p442 = scmp.ne.s32.totalorder %s431, %s434
      %p443 = scmp.eq.s32.totalorder %s34, 3
      %p444 = por %p442, %p443
      %p445 = scmp.ne.s32.totalorder %s434, %s435
      %p446 = scmp.eq.s32.totalorder %s34, 0
      %p447 = por %p445, %p446
      %p448 = scmp.ne.s32.totalorder %s434, %s435
      %p449 = scmp.eq.s32.totalorder %s35, 3
      %p450 = por %p448, %p449
      %p452 = scmp.ne.s32.totalorder %s435, %s451
      %p453 = scmp.eq.s32.totalorder %s35, 0
      %p454 = por %p452, %p453
      %s456 = sadd.s32 %s455, 1
      %p459 = scmp.eq.s32.totalorder %s29, 3
      %p460 = scmp.ne.s32.totalorder %s455, %s457
      %p461 = scmp.eq.s32.totalorder %s29, 0
      %p462 = por %p460, %p461
      %p463 = scmp.ne.s32.totalorder %s455, %s457
      %p464 = scmp.eq.s32.totalorder %s34, 3
      %p465 = por %p463, %p464
      %p466 = scmp.ne.s32.totalorder %s457, %s458
      %p467 = scmp.eq.s32.totalorder %s34, 0
      %p468 = por %p466, %p467
      %p469 = scmp.ne.s32.totalorder %s457, %s458
      %p470 = scmp.eq.s32.totalorder %s35, 3
      %p471 = por %p469, %p470
      %p473 = scmp.ne.s32.totalorder %s458, %s472
      %p474 = scmp.eq.s32.totalorder %s35, 0
      %p475 = por %p473, %p474
      %s477 = sadd.s32 %s476, 1
      %p480 = scmp.eq.s32.totalorder %s29, 3
      %p481 = scmp.ne.s32.totalorder %s476, %s478
      %p482 = scmp.eq.s32.totalorder %s29, 0
      %p483 = por %p481, %p482
      %p484 = scmp.ne.s32.totalorder %s476, %s478
      %p485 = scmp.eq.s32.totalorder %s34, 3
      %p486 = por %p484, %p485
      %p487 = scmp.ne.s32.totalorder %s478, %s479
      %p488 = scmp.eq.s32.totalorder %s34, 0
      %p489 = por %p487, %p488
      %p490 = scmp.ne.s32.totalorder %s478, %s479
      %p491 = scmp.eq.s32.totalorder %s35, 3
      %p492 = por %p490, %p491
      %p494 = scmp.ne.s32.totalorder %s479, %s493
      %p495 = scmp.eq.s32.totalorder %s35, 0
      %p496 = por %p494, %p495
      %s498 = sadd.s32 %s497, 1
      %p501 = scmp.eq.s32.totalorder %s29, 3
      %p502 = scmp.ne.s32.totalorder %s497, %s499
      %p503 = scmp.eq.s32.totalorder %s29, 0
      %p504 = por %p502, %p503
      %p505 = scmp.ne.s32.totalorder %s497, %s499
      %p506 = scmp.eq.s32.totalorder %s34, 3
      %p507 = por %p505, %p506
      %p508 = scmp.ne.s32.totalorder %s499, %s500
      %p509 = scmp.eq.s32.totalorder %s34, 0
      %p510 = por %p508, %p509
      %p511 = scmp.ne.s32.totalorder %s499, %s500
      %p512 = scmp.eq.s32.totalorder %s35, 3
      %p513 = por %p511, %p512
      %p515 = scmp.ne.s32.totalorder %s500, %s514
      %p516 = scmp.eq.s32.totalorder %s35, 0
      %p517 = por %p515, %p516
      %s519 = sadd.s32 %s518, 1
      %p522 = scmp.eq.s32.totalorder %s29, 3
      %p523 = scmp.ne.s32.totalorder %s518, %s520
      %p524 = scmp.eq.s32.totalorder %s29, 0
      %p525 = por %p523, %p524
      %p526 = scmp.ne.s32.totalorder %s518, %s520
      %p527 = scmp.eq.s32.totalorder %s34, 3
      %p528 = por %p526, %p527
      %p529 = scmp.ne.s32.totalorder %s520, %s521
      %p530 = scmp.eq.s32.totalorder %s34, 0
      %p531 = por %p529, %p530
      %p532 = scmp.ne.s32.totalorder %s520, %s521
      %p533 = scmp.eq.s32.totalorder %s35, 3
      %p534 = por %p532, %p533
      %p536 = scmp.ne.s32.totalorder %s521, %s535
      %p537 = scmp.eq.s32.totalorder %s35, 0
      %p538 = por %p536, %p537
      %s539 = ssub.s32 %s36, %s48
      %p540 = scmp.eq.s32.totalorder %s539, 0
      %s542 = sadd.s32 %s541, 1
      %s543 = scalar_select %p540, %s541, %s542
      %p546 = pneg %p540
      %p547 = scmp.eq.s32.totalorder %s29, 3
      %p548 = por %p546, %p547
      %p549 = scmp.ne.s32.totalorder %s541, %s544
      %p550 = scmp.eq.s32.totalorder %s29, 0
      %p551 = por %p549, %p550
      %p552 = scmp.ne.s32.totalorder %s541, %s544
      %p553 = scmp.eq.s32.totalorder %s34, 3
      %p554 = por %p552, %p553
      %p555 = scmp.ne.s32.totalorder %s544, %s545
      %p556 = scmp.eq.s32.totalorder %s34, 0
      %p557 = por %p555, %p556
      %p558 = scmp.ne.s32.totalorder %s544, %s545
      %p559 = scmp.eq.s32.totalorder %s35, 3
      %p560 = por %p558, %p559
      %p562 = scmp.ne.s32.totalorder %s545, %s561
      %p563 = scmp.eq.s32.totalorder %s35, 0
      %p564 = por %p562, %p563
      %p565 = scmp.le.s32.totalorder 1, %s29
      %p566 = scmp.lt.s32.totalorder %s29, 5
      %p567 = pnand %p565, %p566
      %p568 = pneg %p567
      // Predicated region
      $region9: #{model_forward.1} parent=5 // pred_check
        _
      $region10: #{model_forward.1} parent=5 // pred_check_branch
        %570 = sbr.rel (%p567) target = $region12
      $region11: #{model_forward.1} parent=5 // pred_region
        %s571 = ssub.s32 %s29, 1
        // Predicated region
        $region13: #{model_forward.1} parent=11 // pred_check
          %p572 = pneg %p114
        $region14: #{model_forward.1} parent=11 // pred_check_branch
          %574 = sbr.rel (%p572) target = $region16
        $region15: #{model_forward.1} parent=11 // pred_region
          _
        $region16: #{model_forward.1} parent=11 // pred_fallthru
          _
        // Predicated region
        $region17: #{model_forward.1} parent=11 // pred_check
          %p575 = pneg %p135
        $region18: #{model_forward.1} parent=11 // pred_check_branch
          %577 = sbr.rel (%p575) target = $region20
        $region19: #{model_forward.1} parent=11 // pred_region
          _
        $region20: #{model_forward.1} parent=11 // pred_fallthru
          _
        // Predicated region
        $region21: #{model_forward.1} parent=11 // pred_check
          %p578 = pneg %p468
        $region22: #{model_forward.1} parent=11 // pred_check_branch
          %580 = sbr.rel (%p578) target = $region24
        $region23: #{model_forward.1} parent=11 // pred_region
          _
        $region24: #{model_forward.1} parent=11 // pred_fallthru
          _
        // Predicated region
        $region25: #{model_forward.1} parent=11 // pred_check
          %p581 = pneg %p489
        $region26: #{model_forward.1} parent=11 // pred_check_branch
          %583 = sbr.rel (%p581) target = $region28
        $region27: #{model_forward.1} parent=11 // pred_region
          _
        $region28: #{model_forward.1} parent=11 // pred_fallthru
          _
        // Predicated region
        $region29: #{model_forward.1} parent=11 // pred_check
          %p584 = pneg %p510
        $region30: #{model_forward.1} parent=11 // pred_check_branch
          %586 = sbr.rel (%p584) target = $region32
        $region31: #{model_forward.1} parent=11 // pred_region
          _
        $region32: #{model_forward.1} parent=11 // pred_fallthru
          _
        // Predicated region
        $region33: #{model_forward.1} parent=11 // pred_check
          %p587 = pneg %p531
        $region34: #{model_forward.1} parent=11 // pred_check_branch
          %589 = sbr.rel (%p587) target = $region36
        $region35: #{model_forward.1} parent=11 // pred_region
          _
        $region36: #{model_forward.1} parent=11 // pred_fallthru
          _
      $region12: #{model_forward.1} parent=5 // pred_fallthru
        _
      %p590 = scmp.lt.s32.totalorder %s29, 4
      // Predicated region
      $region37: #{model_forward.1} parent=5 // pred_check
        %p591 = pneg %p590
      $region38: #{model_forward.1} parent=5 // pred_check_branch
        %593 = sbr.rel (%p591) target = $region40
      $region39: #{model_forward.1} parent=5 // pred_region
        // Predicated region
        $region41: #{model_forward.1} parent=39 // pred_check
          %p594 = pneg %p61
        $region42: #{model_forward.1} parent=39 // pred_check_branch
          %596 = sbr.rel (%p594) target = $region44
        $region43: #{model_forward.1} parent=39 // pred_region
          %p597 = scmp.lt.s32.totalorder %s36, 1
          %s598 = scalar_select %p597, %s36, 1
          %s599 = smul.addr %s598, 8
          %s600 = scalar_lea.vmem %s0, %s599
        $region44: #{model_forward.1} parent=39 // pred_fallthru
          _
        // Predicated region
        $region45: #{model_forward.1} parent=39 // pred_check
          %p601 = pneg %p87
        $region46: #{model_forward.1} parent=39 // pred_check_branch
          %603 = sbr.rel (%p601) target = $region48
        $region47: #{model_forward.1} parent=39 // pred_region
          %p604 = scmp.lt.s32.totalorder %s36, 1
          %s605 = scalar_select %p604, %s36, 1
          %s606 = scalar_lea.vmem %s1, %s605
        $region48: #{model_forward.1} parent=39 // pred_fallthru
          _
        // Predicated region
        $region49: #{model_forward.1} parent=39 // pred_check
          %p607 = pneg %p155
        $region50: #{model_forward.1} parent=39 // pred_check_branch
          %609 = sbr.rel (%p607) target = $region52
        $region51: #{model_forward.1} parent=39 // pred_region
          %p610 = scmp.lt.s32.totalorder %s37, 1
          %s611 = scalar_select %p610, %s37, 1
          %s612 = smul.addr %s611, 4
          %s613 = smul.addr %s612, 4
          %s614 = scalar_lea.vmem %s4, %s613
        $region52: #{model_forward.1} parent=39 // pred_fallthru
          _
        // Predicated region
        $region53: #{model_forward.1} parent=39 // pred_check
          %p615 = pneg %p181
        $region54: #{model_forward.1} parent=39 // pred_check_branch
          %617 = sbr.rel (%p615) target = $region56
        $region55: #{model_forward.1} parent=39 // pred_region
          %p618 = scmp.lt.s32.totalorder %s37, 1
          %s619 = scalar_select %p618, %s37, 1
          %s620 = scalar_lea.vmem %s5, %s619
        $region56: #{model_forward.1} parent=39 // pred_fallthru
          _
        // Predicated region
        $region57: #{model_forward.1} parent=39 // pred_check
          %p621 = pneg %p207
        $region58: #{model_forward.1} parent=39 // pred_check_branch
          %623 = sbr.rel (%p621) target = $region60
        $region59: #{model_forward.1} parent=39 // pred_region
          %p624 = scmp.lt.s32.totalorder %s37, 1
          %s625 = scalar_select %p624, %s37, 1
          %s626 = smul.addr %s625, 4
          %s627 = smul.addr %s626, 4
          %s628 = scalar_lea.vmem %s6, %s627
        $region60: #{model_forward.1} parent=39 // pred_fallthru
          _
        // Predicated region
        $region61: #{model_forward.1} parent=39 // pred_check
          %p629 = pneg %p233
        $region62: #{model_forward.1} parent=39 // pred_check_branch
          %631 = sbr.rel (%p629) target = $region64
        $region63: #{model_forward.1} parent=39 // pred_region
          %p632 = scmp.lt.s32.totalorder %s37, 1
          %s633 = scalar_select %p632, %s37, 1
          %s634 = scalar_lea.vmem %s7, %s633
        $region64: #{model_forward.1} parent=39 // pred_fallthru
          _
        // Predicated region
        $region65: #{model_forward.1} parent=39 // pred_check
          %p635 = pneg %p259
        $region66: #{model_forward.1} parent=39 // pred_check_branch
          %637 = sbr.rel (%p635) target = $region68
        $region67: #{model_forward.1} parent=39 // pred_region
          %p638 = scmp.lt.s32.totalorder %s37, 1
          %s639 = scalar_select %p638, %s37, 1
          %s640 = scalar_lea.vmem %s8, %s639
        $region68: #{model_forward.1} parent=39 // pred_fallthru
          _
        // Predicated region
        $region69: #{model_forward.1} parent=39 // pred_check
          %p641 = pneg %p285
        $region70: #{model_forward.1} parent=39 // pred_check_branch
          %643 = sbr.rel (%p641) target = $region72
        $region71: #{model_forward.1} parent=39 // pred_region
          %p644 = scmp.lt.s32.totalorder %s37, 1
          %s645 = scalar_select %p644, %s37, 1
          %s646 = scalar_lea.vmem %s9, %s645
        $region72: #{model_forward.1} parent=39 // pred_fallthru
          _
        // Predicated region
        $region73: #{model_forward.1} parent=39 // pred_check
          %p647 = pneg %p311
        $region74: #{model_forward.1} parent=39 // pred_check_branch
          %649 = sbr.rel (%p647) target = $region76
        $region75: #{model_forward.1} parent=39 // pred_region
          %p650 = scmp.lt.s32.totalorder %s37, 1
          %s651 = scalar_select %p650, %s37, 1
          %s652 = smul.addr %s651, 4
          %s653 = smul.addr %s652, 4
          %s654 = scalar_lea.vmem %s10, %s653
        $region76: #{model_forward.1} parent=39 // pred_fallthru
          _
        // Predicated region
        $region77: #{model_forward.1} parent=39 // pred_check
          %p655 = pneg %p337
        $region78: #{model_forward.1} parent=39 // pred_check_branch
          %657 = sbr.rel (%p655) target = $region80
        $region79: #{model_forward.1} parent=39 // pred_region
          %p658 = scmp.lt.s32.totalorder %s37, 1
          %s659 = scalar_select %p658, %s37, 1
          %s660 = scalar_lea.vmem %s11, %s659
        $region80: #{model_forward.1} parent=39 // pred_fallthru
          _
        // Predicated region
        $region81: #{model_forward.1} parent=39 // pred_check
          %p661 = pneg %p363
        $region82: #{model_forward.1} parent=39 // pred_check_branch
          %663 = sbr.rel (%p661) target = $region84
        $region83: #{model_forward.1} parent=39 // pred_region
          %p664 = scmp.lt.s32.totalorder %s37, 1
          %s665 = scalar_select %p664, %s37, 1
          %s666 = smul.addr %s665, 8
          %s667 = smul.addr %s666, 4
          %s668 = scalar_lea.vmem %s12, %s667
        $region84: #{model_forward.1} parent=39 // pred_fallthru
          _
        // Predicated region
        $region85: #{model_forward.1} parent=39 // pred_check
          %p669 = pneg %p389
        $region86: #{model_forward.1} parent=39 // pred_check_branch
          %671 = sbr.rel (%p669) target = $region88
        $region87: #{model_forward.1} parent=39 // pred_region
          %p672 = scmp.lt.s32.totalorder %s37, 1
          %s673 = scalar_select %p672, %s37, 1
          %s674 = scalar_lea.vmem %s13, %s673
        $region88: #{model_forward.1} parent=39 // pred_fallthru
          _
        // Predicated region
        $region89: #{model_forward.1} parent=39 // pred_check
          %p675 = pneg %p415
        $region90: #{model_forward.1} parent=39 // pred_check_branch
          %677 = sbr.rel (%p675) target = $region92
        $region91: #{model_forward.1} parent=39 // pred_region
          %p678 = scmp.lt.s32.totalorder %s37, 1
          %s679 = scalar_select %p678, %s37, 1
          %s680 = scalar_lea.vmem %s14, %s679
        $region92: #{model_forward.1} parent=39 // pred_fallthru
          _
        // Predicated region
        $region93: #{model_forward.1} parent=39 // pred_check
          %p681 = pneg %p441
        $region94: #{model_forward.1} parent=39 // pred_check_branch
          %683 = sbr.rel (%p681) target = $region96
        $region95: #{model_forward.1} parent=39 // pred_region
          %p684 = scmp.lt.s32.totalorder %s37, 1
          %s685 = scalar_select %p684, %s37, 1
          %s686 = scalar_lea.vmem %s15, %s685
        $region96: #{model_forward.1} parent=39 // pred_fallthru
          _
      $region40: #{model_forward.1} parent=5 // pred_fallthru
        _
      %p687 = scmp.le.s32.totalorder 1, %s29
      %p688 = scmp.lt.s32.totalorder %s29, 5
      %p689 = pnand %p687, %p688
      %p690 = pneg %p689
      // Predicated region
      $region97: #{model_forward.1} parent=5 // pred_check
        _
      $region98: #{model_forward.1} parent=5 // pred_check_branch
        %692 = sbr.rel (%p689) target = $region100
      $region99: #{model_forward.1} parent=5 // pred_region
        %s693 = ssub.s32 %s29, 1
        %p694 = scmp.lt.s32.totalorder %s38, 1
        %s695 = scalar_select %p694, %s38, 1
        %s696 = smul.addr %s695, 8
        %s697 = scalar_lea.vmem %s0, %s696
        %p698 = pneg %p67
        %p699 = pneg %p64
        %p700 = scmp.lt.s32.totalorder %s38, 1
        %s701 = scalar_select %p700, %s38, 1
        %s702 = scalar_lea.vmem %s1, %s701
        %p703 = pneg %p93
        %p704 = pneg %p90
        %p705 = pneg %p114
        %p706 = pneg %p111
        %p707 = pneg %p135
        %p708 = pneg %p132
        %p709 = scmp.lt.s32.totalorder %s39, 1
        %s710 = scalar_select %p709, %s39, 1
        %s711 = smul.addr %s710, 4
        %s712 = smul.addr %s711, 4
        %s713 = scalar_lea.vmem %s4, %s712
        %p714 = pneg %p161
        %p715 = pneg %p158
        %p716 = scmp.lt.s32.totalorder %s39, 1
        %s717 = scalar_select %p716, %s39, 1
        %s718 = scalar_lea.vmem %s5, %s717
        %p719 = pneg %p187
        %p720 = pneg %p184
        %p721 = scmp.lt.s32.totalorder %s39, 1
        %s722 = scalar_select %p721, %s39, 1
        %s723 = smul.addr %s722, 4
        %s724 = smul.addr %s723, 4
        %s725 = scalar_lea.vmem %s6, %s724
        %p726 = pneg %p213
        %p727 = pneg %p210
        %p728 = scmp.lt.s32.totalorder %s39, 1
        %s729 = scalar_select %p728, %s39, 1
        %s730 = scalar_lea.vmem %s7, %s729
        %p731 = pneg %p239
        %p732 = pneg %p236
        %p733 = scmp.lt.s32.totalorder %s39, 1
        %s734 = scalar_select %p733, %s39, 1
        %s735 = scalar_lea.vmem %s8, %s734
        %p736 = pneg %p265
        %p737 = pneg %p262
        %p738 = scmp.lt.s32.totalorder %s39, 1
        %s739 = scalar_select %p738, %s39, 1
        %s740 = scalar_lea.vmem %s9, %s739
        %p741 = pneg %p291
        %p742 = pneg %p288
        %p743 = scmp.lt.s32.totalorder %s39, 1
        %s744 = scalar_select %p743, %s39, 1
        %s745 = smul.addr %s744, 4
        %s746 = smul.addr %s745, 4
        %s747 = scalar_lea.vmem %s10, %s746
        %p748 = pneg %p317
        %p749 = pneg %p314
        %p750 = scmp.lt.s32.totalorder %s39, 1
        %s751 = scalar_select %p750, %s39, 1
        %s752 = scalar_lea.vmem %s11, %s751
        %p753 = pneg %p343
        %p754 = pneg %p340
        %p755 = scmp.lt.s32.totalorder %s39, 1
        %s756 = scalar_select %p755, %s39, 1
        %s757 = smul.addr %s756, 8
        %s758 = smul.addr %s757, 4
        %s759 = scalar_lea.vmem %s12, %s758
        %p760 = pneg %p369
        %p761 = pneg %p366
        %p762 = scmp.lt.s32.totalorder %s39, 1
        %s763 = scalar_select %p762, %s39, 1
        %s764 = scalar_lea.vmem %s13, %s763
        %p765 = pneg %p395
        %p766 = pneg %p392
        %p767 = scmp.lt.s32.totalorder %s39, 1
        %s768 = scalar_select %p767, %s39, 1
        %s769 = scalar_lea.vmem %s14, %s768
        %p770 = pneg %p421
        %p771 = pneg %p418
        %p772 = scmp.lt.s32.totalorder %s39, 1
        %s773 = scalar_select %p772, %s39, 1
        %s774 = scalar_lea.vmem %s15, %s773
        %p775 = pneg %p447
        %p776 = pneg %p444
        %p777 = pneg %p468
        %p778 = pneg %p465
        %p779 = pneg %p489
        %p780 = pneg %p486
        %p781 = pneg %p510
        %p782 = pneg %p507
        %p783 = pneg %p531
        %p784 = pneg %p528
        %p785 = pneg %p557
        %p786 = pneg %p554
        %s787 = sand.u32 %s544, 1
        %s788 = scalar_lea.sflag [#allocation5], %s787
        %s789 = sand.u32 %s544, 1
        %s790 = scalar_lea.vmem [#allocation4], %s789
        %p791 = scmp.lt.s32.totalorder %s38, 1
        %s792 = scalar_select %p791, %s38, 1
        %s793 = smul.addr %s792, 8
        %s794 = scalar_lea.vmem %s0, %s793
        %p795 = scmp.lt.s32.totalorder %s38, 1
        %s796 = scalar_select %p795, %s38, 1
        %s797 = scalar_lea.vmem %s1, %s796
        %p798 = scmp.lt.s32.totalorder %s39, 1
        %s799 = scalar_select %p798, %s39, 1
        %s800 = smul.addr %s799, 4
        %s801 = smul.addr %s800, 4
        %s802 = scalar_lea.vmem %s4, %s801
        %p803 = scmp.lt.s32.totalorder %s39, 1
        %s804 = scalar_select %p803, %s39, 1
        %s805 = scalar_lea.vmem %s5, %s804
        %p806 = scmp.lt.s32.totalorder %s39, 1
        %s807 = scalar_select %p806, %s39, 1
        %s808 = smul.addr %s807, 4
        %s809 = smul.addr %s808, 4
        %s810 = scalar_lea.vmem %s6, %s809
        %p811 = scmp.lt.s32.totalorder %s39, 1
        %s812 = scalar_select %p811, %s39, 1
        %s813 = scalar_lea.vmem %s7, %s812
        %p814 = scmp.lt.s32.totalorder %s39, 1
        %s815 = scalar_select %p814, %s39, 1
        %s816 = scalar_lea.vmem %s8, %s815
        %p817 = scmp.lt.s32.totalorder %s39, 1
        %s818 = scalar_select %p817, %s39, 1
        %s819 = scalar_lea.vmem %s9, %s818
        %p820 = scmp.lt.s32.totalorder %s39, 1
        %s821 = scalar_select %p820, %s39, 1
        %s822 = smul.addr %s821, 4
        %s823 = smul.addr %s822, 4
        %s824 = scalar_lea.vmem %s10, %s823
        %p825 = scmp.lt.s32.totalorder %s39, 1
        %s826 = scalar_select %p825, %s39, 1
        %s827 = scalar_lea.vmem %s11, %s826
        %p828 = scmp.lt.s32.totalorder %s39, 1
        %s829 = scalar_select %p828, %s39, 1
        %s830 = smul.addr %s829, 8
        %s831 = smul.addr %s830, 4
        %s832 = scalar_lea.vmem %s12, %s831
        %p833 = scmp.lt.s32.totalorder %s39, 1
        %s834 = scalar_select %p833, %s39, 1
        %s835 = scalar_lea.vmem %s13, %s834
        %p836 = scmp.lt.s32.totalorder %s39, 1
        %s837 = scalar_select %p836, %s39, 1
        %s838 = scalar_lea.vmem %s14, %s837
        %p839 = scmp.lt.s32.totalorder %s39, 1
        %s840 = scalar_select %p839, %s39, 1
        %s841 = scalar_lea.vmem %s15, %s840
        %p843 = scmp.eq.s32.totalorder %s39, 0
        // Predicated region
        $region101: #{model_forward.1} parent=99 // pred_check
          %p844 = pneg %p843
        $region102: #{model_forward.1} parent=99 // pred_check_branch
          %846 = sbr.rel (%p844) target = $region104
        $region103: #{model_forward.1} parent=99 // pred_region
          %v847 = vld [vmem:[%s794] sm:$0xff]
          %v848 = vld [vmem:[%s2] sm:$0x1]
          %v849 = vld [vmem:[%s3] sm:$0x1]
          %vm850 = vcmask 261120
          %v851 = vsel %vm850, %v847, 0.0
          %852 = vadd.xlane.f32.xlu0 %v851
          %v853 = vpop.xlane.xlu0 %852
          %v854 = vrcp.pop 32.0
          %v855 = vmul.f32 %v853, %v854
          %v856 = vsub.f32 %v847, %v855
          %v857 = vmul.f32 %v856, %v856
          %v858 = vsel %vm850, %v857, 0.0
          %859 = vadd.xlane.f32.xlu0 %v858
          %v860 = vpop.xlane.xlu0 %859
          %v861 = vmul.f32 %v860, %v854
          %v862 = vadd.f32 %v861, 1e-12
          %v863 = vrsqrt.pop %v862
          %v864 = vmul.f32 %v856, %v863
          %v866 = vlaneseq
          %v867 = vshrl.u32 %v866, 7
          %v868 = vsub.s32 0, %v867
          %v869 = vrot.slane %v848, %v868
          %v871 = vmul.f32 %v864, %v869
          %v873 = vlaneseq
          %v874 = vshrl.u32 %v873, 7
          %v875 = vsub.s32 0, %v874
          %v876 = vrot.slane %v849, %v875
          %v878 = vadd.f32 %v871, %v876
          %879 = vst.msk [vmem:[#allocation2] sm:$0xff] %vm850, %v878
        $region104: #{model_forward.1} parent=99 // pred_fallthru
          _
        %v880 = vld [vmem:[#allocation2] sm:$0xff]
        %v881 = vpack.c.bf16 %v880, %v880
        %v882 = vld [vmem:[%s802] sm:$0xf]
        %v883 = vld [vmem:[%s802 + $0x4] sm:$0xf]
        %v884 = vld [vmem:[%s802 + $0x8] sm:$0xf]
        %v885 = vld [vmem:[%s802 + $0xc] sm:$0xf]
        %v886 = vld [vmem:[%s805] sm:$0x1]
        %v888 = vlaneseq
        %v889 = vshrl.u32 %v888, 7
        %v890 = vsub.s32 0, %v889
        %v891 = vrot.slane %v886, %v890
        %v897 = vunpack.c.l.b16 %v882
        %v898 = vunpack.c.l.b16 %v883
        %v899 = vunpack.c.l.b16 %v884
        %v900 = vunpack.c.l.b16 %v885
        %v901 = vpack.c.b16 %v898, %v897
        %v902 = vpack.c.b16 %v900, %v899
        %vm905 = vcmask 261120
        %v907 = vsel %vm905, %v881, 0
        %909 = vmatprep.subr.bf16.mxu0 0
        %910 = vmatpush1.bf16.msra.mxu0 0
        %911 = vmatprep.subr.bf16.mxu0 0
        %912 = vmatpush1.bf16.msra.mxu0 0
        %913 = vmatprep.subr.bf16.mxu0 0
        %914 = vmatpush1.bf16.msra.mxu0 0
        %915 = vmatprep.subr.bf16.mxu0 0
        %916 = vmatpush1.bf16.msra.mxu0 0
        %917 = vmatprep.subr.bf16.mxu0 0
        %918 = vmatpush1.bf16.msra.mxu0 0
        %919 = vmatprep.subr.bf16.mxu0 0
        %920 = vmatpush1.bf16.msra.mxu0 0
        %921 = vmatprep.subr.bf16.mxu0 0
        %922 = vmatpush1.bf16.msra.mxu0 %v902
        %923 = vmatprep.subr.bf16.mxu0 0
        %924 = vmatpush1.bf16.msra.mxu0 %v901
        %925 = vmatprep.subr.bf16.mxu0 0
        %926 = vmatpush2.bf16.msra.mxu0 0
        %927 = vmatprep.subr.bf16.mxu0 0
        %928 = vmatpush2.bf16.msra.mxu0 0
        %929 = vmatprep.subr.bf16.mxu0 0
        %930 = vmatpush2.bf16.msra.mxu0 0
        %931 = vmatprep.subr.bf16.mxu0 0
        %932 = vmatpush2.bf16.msra.mxu0 0
        %933 = vmatprep.subr.bf16.mxu0 0
        %934 = vmatpush2.bf16.msra.mxu0 0
        %935 = vmatprep.subr.bf16.mxu0 0
        %936 = vmatpush2.bf16.msra.mxu0 0
        %937 = vmatprep.subr.bf16.mxu0 0
        %938 = vmatpush2.bf16.msra.mxu0 0
        %939 = vmatprep.subr.bf16.mxu0 0
        %940 = vmatpush2.bf16.msra.mxu0 0
        %941 = vmatprep.mubr.bf16.mxu0 0
        %942 = vmatmul.mubr.bf16.gmra.mxu0 %v907
        %v943 = vpop.f32.mrf.mxu0
        %v944 = vadd.f32 %v891, %v943
        %v945 = vpop.f32.mrf.mxu0
        %v946 = vpop.f32.mrf.mxu0
        %v947 = vpop.f32.mrf.mxu0
        %948 = vdwg.mxu0
        %v949 = vld [vmem:[%s797] sm:$0x1]
        %v950 = vpack.c.bf16 %v944, %v944
        %v952 = vlaneseq
        %v953 = vshrl.u32 %v952, 7
        %v954 = vsub.s32 0, %v953
        %v955 = vrot.slane %v949, %v954
        %958 = vrot.lane.b32.xlu0 %v950, 96
        %v959 = vpop.permute.xlu0 %958
        %vm960 = vcmask 130048
        %v962 = vsel %vm960, %v950, 0
        %v965 = vsel %vm960, %v959, 0
        %967 = vmatprep.subr.bf16.mxu0 0
        %968 = vmatpush1.bf16.xpose.msra.mxu0 0
        %969 = vmatprep.subr.bf16.mxu0 0
        %970 = vmatpush1.bf16.xpose.msra.mxu0 0
        %971 = vmatprep.subr.bf16.mxu0 0
        %972 = vmatpush1.bf16.xpose.msra.mxu0 0
        %973 = vmatprep.subr.bf16.mxu0 0
        %974 = vmatpush1.bf16.xpose.msra.mxu0 0
        %975 = vmatprep.subr.bf16.mxu0 0
        %976 = vmatpush1.bf16.xpose.msra.mxu0 0
        %977 = vmatprep.subr.bf16.mxu0 0
        %978 = vmatpush1.bf16.xpose.msra.mxu0 0
        %979 = vmatprep.subr.bf16.mxu0 0
        %980 = vmatpush1.bf16.xpose.msra.mxu0 0
        %981 = vmatprep.subr.bf16.mxu0 0
        %982 = vmatpush1.bf16.xpose.msra.mxu0 %v965
        %983 = vmatprep.subr.bf16.mxu0 0
        %984 = vmatpush2.bf16.xpose.msra.mxu0 0
        %985 = vmatprep.subr.bf16.mxu0 0
        %986 = vmatpush2.bf16.xpose.msra.mxu0 0
        %987 = vmatprep.subr.bf16.mxu0 0
        %988 = vmatpush2.bf16.xpose.msra.mxu0 0
        %989 = vmatprep.subr.bf16.mxu0 0
        %990 = vmatpush2.bf16.xpose.msra.mxu0 0
        %991 = vmatprep.subr.bf16.mxu0 0
        %992 = vmatpush2.bf16.xpose.msra.mxu0 0
        %993 = vmatprep.subr.bf16.mxu0 0
        %994 = vmatpush2.bf16.xpose.msra.mxu0 0
        %995 = vmatprep.subr.bf16.mxu0 0
        %996 = vmatpush2.bf16.xpose.msra.mxu0 0
        %997 = vmatprep.subr.bf16.mxu0 0
        %998 = vmatpush2.bf16.xpose.msra.mxu0 0
        %999 = vmatprep.mubr.bf16.mxu0 0
        %1000 = vmatmul.mubr.bf16.gmra.mxu0 %v962
        %v1001 = vpop.f32.mrf.mxu0
        %v1002 = vadd.f32 %v955, %v1001
        %v1003 = vpop.f32.mrf.mxu0
        %v1004 = vpop.f32.mrf.mxu0
        %v1005 = vpop.f32.mrf.mxu0
        %1006 = vdwg.mxu0
        %vm1007 = vcmask 64512
        %v1008 = vsel %vm1007, %v1002, -inf
        %1009 = vmax.xlane.f32.xlu0 %v1008
        %v1010 = vpop.xlane.xlu0 %1009
        %v1011 = vsub.f32 %v1002, %v1010
        %v1012 = vmul.f32 %v1011, 1.442695
        %v1013 = vpow.pop %v1012
        %v1014 = vsel %vm1007, %v1013, 0.0
        %1015 = vadd.xlane.f32.xlu0 %v1014
        %v1016 = vpop.xlane.xlu0 %1015
        %v1017 = vrcp.pop %v1016
        %v1018 = vmul.f32 %v1013, %v1017
        %v1019 = vpack.c.bf16 %v1018, %v1018
        %1020 = vrot.lane.b32.xlu0 %v950, 64
        %v1021 = vpop.permute.xlu0 %1020
        %v1023 = vsel %vm1007, %v1019, 0
        %vm1025 = vcmask 1043456
        %v1027 = vsel %vm1025, %v1021, 0
        %1029 = vmatprep.subr.bf16.mxu0 0
        %1030 = vmatpush1.bf16.msra.mxu0 0
        %1031 = vmatprep.subr.bf16.mxu0 0
        %1032 = vmatpush1.bf16.msra.mxu0 0
        %1033 = vmatprep.subr.bf16.mxu0 0
        %1034 = vmatpush1.bf16.msra.mxu0 0
        %1035 = vmatprep.subr.bf16.mxu0 0
        %1036 = vmatpush1.bf16.msra.mxu0 0
        %1037 = vmatprep.subr.bf16.mxu0 0
        %1038 = vmatpush1.bf16.msra.mxu0 0
        %1039 = vmatprep.subr.bf16.mxu0 0
        %1040 = vmatpush1.bf16.msra.mxu0 0
        %1041 = vmatprep.subr.bf16.mxu0 0
        %1042 = vmatpush1.bf16.msra.mxu0 0
        %1043 = vmatprep.subr.bf16.mxu0 0
        %1044 = vmatpush1.bf16.msra.mxu0 %v1027
        %1045 = vmatprep.subr.bf16.mxu0 0
        %1046 = vmatpush2.bf16.msra.mxu0 0
        %1047 = vmatprep.subr.bf16.mxu0 0
        %1048 = vmatpush2.bf16.msra.mxu0 0
        %1049 = vmatprep.subr.bf16.mxu0 0
        %1050 = vmatpush2.bf16.msra.mxu0 0
        %1051 = vmatprep.subr.bf16.mxu0 0
        %1052 = vmatpush2.bf16.msra.mxu0 0
        %1053 = vmatprep.subr.bf16.mxu0 0
        %1054 = vmatpush2.bf16.msra.mxu0 0
        %1055 = vmatprep.subr.bf16.mxu0 0
        %1056 = vmatpush2.bf16.msra.mxu0 0
        %1057 = vmatprep.subr.bf16.mxu0 0
        %1058 = vmatpush2.bf16.msra.mxu0 0
        %1059 = vmatprep.subr.bf16.mxu0 0
        %1060 = vmatpush2.bf16.msra.mxu0 0
        %1061 = vmatprep.mubr.bf16.mxu0 0
        %1062 = vmatmul.mubr.bf16.gmra.mxu0 %v1023
        %v1063 = vpop.f32.mrf.mxu0
        %v1064 = vadd.f32 0.0, %v1063
        %v1065 = vpop.f32.mrf.mxu0
        %v1066 = vpop.f32.mrf.mxu0
        %v1067 = vpop.f32.mrf.mxu0
        %1068 = vdwg.mxu0
        %1069 = vst.msk [vmem:[#allocation3] sm:$0xff] %vm960, %v1064
        %1070 = vrot.lane.b32.xlu0 %v950, 112
        %v1071 = vpop.permute.xlu0 %1070
        %1072 = vrot.lane.b32.xlu0 %v950, 80
        %v1073 = vpop.permute.xlu0 %1072
        %v1075 = vsel %vm960, %v1071, 0
        %v1078 = vsel %vm960, %v1073, 0
        %1080 = vmatprep.subr.bf16.mxu0 0
        %1081 = vmatpush1.bf16.xpose.msra.mxu0 0
        %1082 = vmatprep.subr.bf16.mxu0 0
        %1083 = vmatpush1.bf16.xpose.msra.mxu0 0
        %1084 = vmatprep.subr.bf16.mxu0 0
        %1085 = vmatpush1.bf16.xpose.msra.mxu0 0
        %1086 = vmatprep.subr.bf16.mxu0 0
        %1087 = vmatpush1.bf16.xpose.msra.mxu0 0
        %1088 = vmatprep.subr.bf16.mxu0 0
        %1089 = vmatpush1.bf16.xpose.msra.mxu0 0
        %1090 = vmatprep.subr.bf16.mxu0 0
        %1091 = vmatpush1.bf16.xpose.msra.mxu0 0
        %1092 = vmatprep.subr.bf16.mxu0 0
        %1093 = vmatpush1.bf16.xpose.msra.mxu0 0
        %1094 = vmatprep.subr.bf16.mxu0 0
        %1095 = vmatpush1.bf16.xpose.msra.mxu0 %v1078
        %1096 = vmatprep.subr.bf16.mxu0 0
        %1097 = vmatpush2.bf16.xpose.msra.mxu0 0
        %1098 = vmatprep.subr.bf16.mxu0 0
        %1099 = vmatpush2.bf16.xpose.msra.mxu0 0
        %1100 = vmatprep.subr.bf16.mxu0 0
        %1101 = vmatpush2.bf16.xpose.msra.mxu0 0
        %1102 = vmatprep.subr.bf16.mxu0 0
        %1103 = vmatpush2.bf16.xpose.msra.mxu0 0
        %1104 = vmatprep.subr.bf16.mxu0 0
        %1105 = vmatpush2.bf16.xpose.msra.mxu0 0
        %1106 = vmatprep.subr.bf16.mxu0 0
        %1107 = vmatpush2.bf16.xpose.msra.mxu0 0
        %1108 = vmatprep.subr.bf16.mxu0 0
        %1109 = vmatpush2.bf16.xpose.msra.mxu0 0
        %1110 = vmatprep.subr.bf16.mxu0 0
        %1111 = vmatpush2.bf16.xpose.msra.mxu0 0
        %1112 = vmatprep.mubr.bf16.mxu0 0
        %1113 = vmatmul.mubr.bf16.gmra.mxu0 %v1075
        %v1114 = vpop.f32.mrf.mxu0
        %v1115 = vadd.f32 %v955, %v1114
        %v1116 = vpop.f32.mrf.mxu0
        %v1117 = vpop.f32.mrf.mxu0
        %v1118 = vpop.f32.mrf.mxu0
        %1119 = vdwg.mxu0
        %v1120 = vsel %vm1007, %v1115, -inf
        %1121 = vmax.xlane.f32.xlu0 %v1120
        %v1122 = vpop.xlane.xlu0 %1121
        %v1123 = vsub.f32 %v1115, %v1122
        %v1124 = vmul.f32 %v1123, 1.442695
        %v1125 = vpow.pop %v1124
        %v1126 = vsel %vm1007, %v1125, 0.0
        %1127 = vadd.xlane.f32.xlu0 %v1126
        %v1128 = vpop.xlane.xlu0 %1127
        %v1129 = vrcp.pop %v1128
        %v1130 = vmul.f32 %v1125, %v1129
        %v1131 = vpack.c.bf16 %v1130, %v1130
        %1132 = vrot.lane.b32.xlu0 %v950, 48
        %v1133 = vpop.permute.xlu0 %1132
        %v1135 = vsel %vm1007, %v1131, 0
        %v1138 = vsel %vm1025, %v1133, 0
        %1140 = vmatprep.subr.bf16.mxu0 0
        %1141 = vmatpush1.bf16.msra.mxu0 0
        %1142 = vmatprep.subr.bf16.mxu0 0
        %1143 = vmatpush1.bf16.msra.mxu0 0
        %1144 = vmatprep.subr.bf16.mxu0 0
        %1145 = vmatpush1.bf16.msra.mxu0 0
        %1146 = vmatprep.subr.bf16.mxu0 0
        %1147 = vmatpush1.bf16.msra.mxu0 0
        %1148 = vmatprep.subr.bf16.mxu0 0
        %1149 = vmatpush1.bf16.msra.mxu0 0
        %1150 = vmatprep.subr.bf16.mxu0 0
        %1151 = vmatpush1.bf16.msra.mxu0 0
        %1152 = vmatprep.subr.bf16.mxu0 0
        %1153 = vmatpush1.bf16.msra.mxu0 0
        %1154 = vmatprep.subr.bf16.mxu0 0
        %1155 = vmatpush1.bf16.msra.mxu0 %v1138
        %1156 = vmatprep.subr.bf16.mxu0 0
        %1157 = vmatpush2.bf16.msra.mxu0 0
        %1158 = vmatprep.subr.bf16.mxu0 0
        %1159 = vmatpush2.bf16.msra.mxu0 0
        %1160 = vmatprep.subr.bf16.mxu0 0
        %1161 = vmatpush2.bf16.msra.mxu0 0
        %1162 = vmatprep.subr.bf16.mxu0 0
        %1163 = vmatpush2.bf16.msra.mxu0 0
        %1164 = vmatprep.subr.bf16.mxu0 0
        %1165 = vmatpush2.bf16.msra.mxu0 0
        %1166 = vmatprep.subr.bf16.mxu0 0
        %1167 = vmatpush2.bf16.msra.mxu0 0
        %1168 = vmatprep.subr.bf16.mxu0 0
        %1169 = vmatpush2.bf16.msra.mxu0 0
        %1170 = vmatprep.subr.bf16.mxu0 0
        %1171 = vmatpush2.bf16.msra.mxu0 0
        %1172 = vmatprep.mubr.bf16.mxu0 0
        %1173 = vmatmul.mubr.bf16.gmra.mxu0 %v1135
        %v1174 = vpop.f32.mrf.mxu0
        %v1175 = vadd.f32 0.0, %v1174
        %v1176 = vpop.f32.mrf.mxu0
        %v1177 = vpop.f32.mrf.mxu0
        %v1178 = vpop.f32.mrf.mxu0
        %1179 = vdwg.mxu0
        %1181 = vrot.lane.b32.xlu0 %v1175, 16
        %v1182 = vpop.permute.xlu0 %1181
        %vm1184 = vcmask 261248
        %1185 = vst.msk [vmem:[#allocation3] sm:$0xff] %vm1184, %v1182
        %v1186 = vld [vmem:[#allocation3] sm:$0xff]
        %v1187 = vpack.c.bf16 %v1186, %v1186
        %v1188 = vld [vmem:[%s810] sm:$0xf]
        %v1189 = vld [vmem:[%s810 + $0x4] sm:$0xf]
        %v1190 = vld [vmem:[%s810 + $0x8] sm:$0xf]
        %v1191 = vld [vmem:[%s810 + $0xc] sm:$0xf]
        %v1192 = vld [vmem:[%s813] sm:$0x1]
        %v1194 = vlaneseq
        %v1195 = vshrl.u32 %v1194, 7
        %v1196 = vsub.s32 0, %v1195
        %v1197 = vrot.slane %v1192, %v1196
        %v1203 = vunpack.c.l.b16 %v1188
        %v1204 = vunpack.c.l.b16 %v1189
        %v1205 = vunpack.c.l.b16 %v1190
        %v1206 = vunpack.c.l.b16 %v1191
        %v1207 = vpack.c.b16 %v1204, %v1203
        %v1208 = vpack.c.b16 %v1206, %v1205
        %v1212 = vsel %vm905, %v1187, 0
        %1214 = vmatprep.subr.bf16.mxu0 0
        %1215 = vmatpush1.bf16.msra.mxu0 0
        %1216 = vmatprep.subr.bf16.mxu0 0
        %1217 = vmatpush1.bf16.msra.mxu0 0
        %1218 = vmatprep.subr.bf16.mxu0 0
        %1219 = vmatpush1.bf16.msra.mxu0 0
        %1220 = vmatprep.subr.bf16.mxu0 0
        %1221 = vmatpush1.bf16.msra.mxu0 0
        %1222 = vmatprep.subr.bf16.mxu0 0
        %1223 = vmatpush1.bf16.msra.mxu0 0
        %1224 = vmatprep.subr.bf16.mxu0 0
        %1225 = vmatpush1.bf16.msra.mxu0 0
        %1226 = vmatprep.subr.bf16.mxu0 0
        %1227 = vmatpush1.bf16.msra.mxu0 %v1208
        %1228 = vmatprep.subr.bf16.mxu0 0
        %1229 = vmatpush1.bf16.msra.mxu0 %v1207
        %1230 = vmatprep.subr.bf16.mxu0 0
        %1231 = vmatpush2.bf16.msra.mxu0 0
        %1232 = vmatprep.subr.bf16.mxu0 0
        %1233 = vmatpush2.bf16.msra.mxu0 0
        %1234 = vmatprep.subr.bf16.mxu0 0
        %1235 = vmatpush2.bf16.msra.mxu0 0
        %1236 = vmatprep.subr.bf16.mxu0 0
        %1237 = vmatpush2.bf16.msra.mxu0 0
        %1238 = vmatprep.subr.bf16.mxu0 0
        %1239 = vmatpush2.bf16.msra.mxu0 0
        %1240 = vmatprep.subr.bf16.mxu0 0
        %1241 = vmatpush2.bf16.msra.mxu0 0
        %1242 = vmatprep.subr.bf16.mxu0 0
        %1243 = vmatpush2.bf16.msra.mxu0 0
        %1244 = vmatprep.subr.bf16.mxu0 0
        %1245 = vmatpush2.bf16.msra.mxu0 0
        %1246 = vmatprep.mubr.bf16.mxu0 0
        %1247 = vmatmul.mubr.bf16.gmra.mxu0 %v1212
        %v1248 = vpop.f32.mrf.mxu0
        %v1249 = vadd.f32 %v1197, %v1248
        %v1250 = vpop.f32.mrf.mxu0
        %v1251 = vpop.f32.mrf.mxu0
        %v1252 = vpop.f32.mrf.mxu0
        %1253 = vdwg.mxu0
        %v1254 = vadd.f32 %v880, %v1249
        %v1255 = vld [vmem:[%s816] sm:$0x1]
        %v1256 = vld [vmem:[%s819] sm:$0x1]
        %v1257 = vsel %vm905, %v1254, 0.0
        %1258 = vadd.xlane.f32.xlu0 %v1257
        %v1259 = vpop.xlane.xlu0 %1258
        %v1260 = vrcp.pop 32.0
        %v1261 = vmul.f32 %v1259, %v1260
        %v1262 = vsub.f32 %v1254, %v1261
        %v1263 = vmul.f32 %v1262, %v1262
        %v1264 = vsel %vm905, %v1263, 0.0
        %1265 = vadd.xlane.f32.xlu0 %v1264
        %v1266 = vpop.xlane.xlu0 %1265
        %v1267 = vmul.f32 %v1266, %v1260
        %v1268 = vadd.f32 %v1267, 1e-12
        %v1269 = vrsqrt.pop %v1268
        %v1270 = vmul.f32 %v1262, %v1269
        %v1272 = vlaneseq
        %v1273 = vshrl.u32 %v1272, 7
        %v1274 = vsub.s32 0, %v1273
        %v1275 = vrot.slane %v1255, %v1274
        %v1277 = vmul.f32 %v1270, %v1275
        %v1279 = vlaneseq
        %v1280 = vshrl.u32 %v1279, 7
        %v1281 = vsub.s32 0, %v1280
        %v1282 = vrot.slane %v1256, %v1281
        %v1284 = vadd.f32 %v1277, %v1282
        %v1285 = vpack.c.bf16 %v1284, %v1284
        %v1286 = vld [vmem:[%s824] sm:$0xf]
        %v1287 = vld [vmem:[%s824 + $0x4] sm:$0xf]
        %v1288 = vld [vmem:[%s824 + $0x8] sm:$0xf]
        %v1289 = vld [vmem:[%s824 + $0xc] sm:$0xf]
        %v1290 = vld [vmem:[%s827] sm:$0x1]
        %v1292 = vlaneseq
        %v1293 = vshrl.u32 %v1292, 7
        %v1294 = vsub.s32 0, %v1293
        %v1295 = vrot.slane %v1290, %v1294
        %v1301 = vunpack.c.l.b16 %v1286
        %v1302 = vunpack.c.l.b16 %v1287
        %v1303 = vunpack.c.l.b16 %v1288
        %v1304 = vunpack.c.l.b16 %v1289
        %v1305 = vpack.c.b16 %v1302, %v1301
        %v1306 = vpack.c.b16 %v1304, %v1303
        %v1310 = vsel %vm905, %v1285, 0
        %1312 = vmatprep.subr.bf16.mxu0 0
        %1313 = vmatpush1.bf16.msra.mxu0 0
        %1314 = vmatprep.subr.bf16.mxu0 0
        %1315 = vmatpush1.bf16.msra.mxu0 0
        %1316 = vmatprep.subr.bf16.mxu0 0
        %1317 = vmatpush1.bf16.msra.mxu0 0
        %1318 = vmatprep.subr.bf16.mxu0 0
        %1319 = vmatpush1.bf16.msra.mxu0 0
        %1320 = vmatprep.subr.bf16.mxu0 0
        %1321 = vmatpush1.bf16.msra.mxu0 0
        %1322 = vmatprep.subr.bf16.mxu0 0
        %1323 = vmatpush1.bf16.msra.mxu0 0
        %1324 = vmatprep.subr.bf16.mxu0 0
        %1325 = vmatpush1.bf16.msra.mxu0 %v1306
        %1326 = vmatprep.subr.bf16.mxu0 0
        %1327 = vmatpush1.bf16.msra.mxu0 %v1305
        %1328 = vmatprep.subr.bf16.mxu0 0
        %1329 = vmatpush2.bf16.msra.mxu0 0
        %1330 = vmatprep.subr.bf16.mxu0 0
        %1331 = vmatpush2.bf16.msra.mxu0 0
        %1332 = vmatprep.subr.bf16.mxu0 0
        %1333 = vmatpush2.bf16.msra.mxu0 0
        %1334 = vmatprep.subr.bf16.mxu0 0
        %1335 = vmatpush2.bf16.msra.mxu0 0
        %1336 = vmatprep.subr.bf16.mxu0 0
        %1337 = vmatpush2.bf16.msra.mxu0 0
        %1338 = vmatprep.subr.bf16.mxu0 0
        %1339 = vmatpush2.bf16.msra.mxu0 0
        %1340 = vmatprep.subr.bf16.mxu0 0
        %1341 = vmatpush2.bf16.msra.mxu0 0
        %1342 = vmatprep.subr.bf16.mxu0 0
        %1343 = vmatpush2.bf16.msra.mxu0 0
        %1344 = vmatprep.mubr.bf16.mxu0 0
        %1345 = vmatmul.mubr.bf16.gmra.mxu0 %v1310
        %v1346 = vpop.f32.mrf.mxu0
        %v1347 = vadd.f32 %v1295, %v1346
        %v1348 = vpop.f32.mrf.mxu0
        %v1349 = vpop.f32.mrf.mxu0
        %v1350 = vpop.f32.mrf.mxu0
        %1351 = vdwg.mxu0
        %v1352 = vmul.f32 %v1347, 0.5
        %v1353 = vmul.f32 %v1347, 0.044715
        %v1354 = vmul.f32 %v1353, %v1347
        %v1355 = vmul.f32 %v1354, %v1347
        %v1356 = vadd.f32 %v1347, %v1355
        %v1357 = vmul.f32 %v1356, 0.7978846
        %v1358 = vtanh.pop %v1357
        %v1359 = vadd.f32 %v1358, 1.0
        %v1360 = vmul.f32 %v1352, %v1359
        %v1361 = vpack.c.bf16 %v1360, %v1360
        %v1362 = vld [vmem:[%s832] sm:$0xf]
        %v1363 = vld [vmem:[%s832 + $0x4] sm:$0xf]
        %v1364 = vld [vmem:[%s832 + $0x8] sm:$0xf]
        %v1365 = vld [vmem:[%s832 + $0xc] sm:$0xf]
        %v1366 = vld [vmem:[%s832 + $0x10] sm:$0xf]
        %v1367 = vld [vmem:[%s832 + $0x14] sm:$0xf]
        %v1368 = vld [vmem:[%s832 + $0x18] sm:$0xf]
        %v1369 = vld [vmem:[%s832 + $0x1c] sm:$0xf]
        %v1370 = vld [vmem:[%s835] sm:$0x1]
        %v1372 = vlaneseq
        %v1373 = vshrl.u32 %v1372, 7
        %v1374 = vsub.s32 0, %v1373
        %v1375 = vrot.slane %v1370, %v1374
        %v1385 = vunpack.c.l.b16 %v1362
        %v1386 = vunpack.c.l.b16 %v1363
        %v1387 = vunpack.c.l.b16 %v1364
        %v1388 = vunpack.c.l.b16 %v1365
        %v1389 = vunpack.c.l.b16 %v1366
        %v1390 = vunpack.c.l.b16 %v1367
        %v1391 = vunpack.c.l.b16 %v1368
        %v1392 = vunpack.c.l.b16 %v1369
        %v1393 = vpack.c.b16 %v1386, %v1385
        %v1394 = vpack.c.b16 %v1388, %v1387
        %v1395 = vpack.c.b16 %v1390, %v1389
        %v1396 = vpack.c.b16 %v1392, %v1391
        %vm1401 = vcmask 523264
        %v1403 = vsel %vm1401, %v1361, 0
        %1405 = vmatprep.subr.bf16.mxu0 0
        %1406 = vmatpush1.bf16.msra.mxu0 0
        %1407 = vmatprep.subr.bf16.mxu0 0
        %1408 = vmatpush1.bf16.msra.mxu0 0
        %1409 = vmatprep.subr.bf16.mxu0 0
        %1410 = vmatpush1.bf16.msra.mxu0 0
        %1411 = vmatprep.subr.bf16.mxu0 0
        %1412 = vmatpush1.bf16.msra.mxu0 0
        %1413 = vmatprep.subr.bf16.mxu0 0
        %1414 = vmatpush1.bf16.msra.mxu0 %v1396
        %1415 = vmatprep.subr.bf16.mxu0 0
        %1416 = vmatpush1.bf16.msra.mxu0 %v1395
        %1417 = vmatprep.subr.bf16.mxu0 0
        %1418 = vmatpush1.bf16.msra.mxu0 %v1394
        %1419 = vmatprep.subr.bf16.mxu0 0
        %1420 = vmatpush1.bf16.msra.mxu0 %v1393
        %1421 = vmatprep.subr.bf16.mxu0 0
        %1422 = vmatpush2.bf16.msra.mxu0 0
        %1423 = vmatprep.subr.bf16.mxu0 0
        %1424 = vmatpush2.bf16.msra.mxu0 0
        %1425 = vmatprep.subr.bf16.mxu0 0
        %1426 = vmatpush2.bf16.msra.mxu0 0
        %1427 = vmatprep.subr.bf16.mxu0 0
        %1428 = vmatpush2.bf16.msra.mxu0 0
        %1429 = vmatprep.subr.bf16.mxu0 0
        %1430 = vmatpush2.bf16.msra.mxu0 0
        %1431 = vmatprep.subr.bf16.mxu0 0
        %1432 = vmatpush2.bf16.msra.mxu0 0
        %1433 = vmatprep.subr.bf16.mxu0 0
        %1434 = vmatpush2.bf16.msra.mxu0 0
        %1435 = vmatprep.subr.bf16.mxu0 0
        %1436 = vmatpush2.bf16.msra.mxu0 0
        %1437 = vmatprep.mubr.bf16.mxu0 0
        %1438 = vmatmul.mubr.bf16.gmra.mxu0 %v1403
        %v1439 = vpop.f32.mrf.mxu0
        %v1440 = vadd.f32 %v1375, %v1439
        %v1441 = vpop.f32.mrf.mxu0
        %v1442 = vpop.f32.mrf.mxu0
        %v1443 = vpop.f32.mrf.mxu0
        %1444 = vdwg.mxu0
        %v1445 = vadd.f32 %v1284, %v1440
        %v1446 = vld [vmem:[%s838] sm:$0x1]
        %v1447 = vld [vmem:[%s841] sm:$0x1]
        %v1448 = vsel %vm905, %v1445, 0.0
        %1449 = vadd.xlane.f32.xlu0 %v1448
        %v1450 = vpop.xlane.xlu0 %1449
        %v1451 = vmul.f32 %v1450, %v1260
        %v1452 = vsub.f32 %v1445, %v1451
        %v1453 = vmul.f32 %v1452, %v1452
        %v1454 = vsel %vm905, %v1453, 0.0
        %1455 = vadd.xlane.f32.xlu0 %v1454
        %v1456 = vpop.xlane.xlu0 %1455
        %v1457 = vmul.f32 %v1456, %v1260
        %v1458 = vadd.f32 %v1457, 1e-12
        %v1459 = vrsqrt.pop %v1458
        %v1460 = vmul.f32 %v1452, %v1459
        %v1462 = vlaneseq
        %v1463 = vshrl.u32 %v1462, 7
        %v1464 = vsub.s32 0, %v1463
        %v1465 = vrot.slane %v1446, %v1464
        %v1467 = vmul.f32 %v1460, %v1465
        %v1469 = vlaneseq
        %v1470 = vshrl.u32 %v1469, 7
        %v1471 = vsub.s32 0, %v1470
        %v1472 = vrot.slane %v1447, %v1471
        %v1474 = vadd.f32 %v1467, %v1472
        %1475 = vst.msk [vmem:[#allocation2] sm:$0xff] %vm905, %v1474
        %p1476 = scmp.eq.s32.totalorder %s39, 1
        // Predicated region
        $region105: #{model_forward.1} parent=99 // pred_check
          %p1477 = pneg %p1476
        $region106: #{model_forward.1} parent=99 // pred_check_branch
          %1479 = sbr.rel (%p1477) target = $region108
        $region107: #{model_forward.1} parent=99 // pred_region
          %v1480 = vpack.c.bf16 %v1474, %v1474
          %v1481 = vld [vmem:[%s16] sm:$0xf]
          %v1482 = vld [vmem:[%s16 + $0x4] sm:$0xf]
          %v1483 = vld [vmem:[%s16 + $0x8] sm:$0xf]
          %v1484 = vld [vmem:[%s16 + $0xc] sm:$0xf]
          %v1485 = vld [vmem:[%s17] sm:$0x1]
          %v1490 = vunpack.c.l.b16 %v1481
          %v1491 = vunpack.c.l.b16 %v1482
          %v1492 = vunpack.c.l.b16 %v1483
          %v1493 = vunpack.c.l.b16 %v1484
          %v1494 = vpack.c.b16 %v1491, %v1490
          %v1495 = vpack.c.b16 %v1493, %v1492
          %v1499 = vsel %vm905, %v1480, 0
          %1501 = vmatprep.subr.bf16.mxu0 0
          %1502 = vmatpush1.bf16.msra.mxu0 0
          %1503 = vmatprep.subr.bf16.mxu0 0
          %1504 = vmatpush1.bf16.msra.mxu0 0
          %1505 = vmatprep.subr.bf16.mxu0 0
          %1506 = vmatpush1.bf16.msra.mxu0 0
          %1507 = vmatprep.subr.bf16.mxu0 0
          %1508 = vmatpush1.bf16.msra.mxu0 0
          %1509 = vmatprep.subr.bf16.mxu0 0
          %1510 = vmatpush1.bf16.msra.mxu0 0
          %1511 = vmatprep.subr.bf16.mxu0 0
          %1512 = vmatpush1.bf16.msra.mxu0 0
          %1513 = vmatprep.subr.bf16.mxu0 0
          %1514 = vmatpush1.bf16.msra.mxu0 %v1495
          %1515 = vmatprep.subr.bf16.mxu0 0
          %1516 = vmatpush1.bf16.msra.mxu0 %v1494
          %1517 = vmatprep.subr.bf16.mxu0 0
          %1518 = vmatpush2.bf16.msra.mxu0 0
          %1519 = vmatprep.subr.bf16.mxu0 0
          %1520 = vmatpush2.bf16.msra.mxu0 0
          %1521 = vmatprep.subr.bf16.mxu0 0
          %1522 = vmatpush2.bf16.msra.mxu0 0
          %1523 = vmatprep.subr.bf16.mxu0 0
          %1524 = vmatpush2.bf16.msra.mxu0 0
          %1525 = vmatprep.subr.bf16.mxu0 0
          %1526 = vmatpush2.bf16.msra.mxu0 0
          %1527 = vmatprep.subr.bf16.mxu0 0
          %1528 = vmatpush2.bf16.msra.mxu0 0
          %1529 = vmatprep.subr.bf16.mxu0 0
          %1530 = vmatpush2.bf16.msra.mxu0 0
          %1531 = vmatprep.subr.bf16.mxu0 0
          %1532 = vmatpush2.bf16.msra.mxu0 0
          %1533 = vmatprep.mubr.bf16.mxu0 0
          %1534 = vmatmul.mubr.bf16.gmra.mxu0 %v1499
          %v1535 = vpop.f32.mrf.mxu0
          %v1536 = vadd.f32 %v1485, %v1535
          %v1537 = vpop.f32.mrf.mxu0
          %v1538 = vpop.f32.mrf.mxu0
          %v1539 = vpop.f32.mrf.mxu0
          %1540 = vdwg.mxu0
          %v1541 = vtanh.pop %v1536
          %v1542 = vpack.c.bf16 %v1541, %v1541
          %v1543 = vld [vmem:[%s18] sm:$0xf]
          %v1544 = vld [vmem:[%s18 + $0x4] sm:$0xf]
          %v1545 = vld [vmem:[%s18 + $0x8] sm:$0xf]
          %v1546 = vld [vmem:[%s18 + $0xc] sm:$0xf]
          %v1547 = vld [vmem:[%s19] sm:$0x1]
          %v1552 = vunpack.c.l.b16 %v1543
          %v1553 = vunpack.c.l.b16 %v1544
          %v1554 = vunpack.c.l.b16 %v1545
          %v1555 = vunpack.c.l.b16 %v1546
          %v1556 = vpack.c.b16 %v1553, %v1552
          %v1557 = vpack.c.b16 %v1555, %v1554
          %v1561 = vsel %vm905, %v1542, 0
          %1563 = vmatprep.subr.bf16.mxu0 0
          %1564 = vmatpush1.bf16.msra.mxu0 0
          %1565 = vmatprep.subr.bf16.mxu0 0
          %1566 = vmatpush1.bf16.msra.mxu0 0
          %1567 = vmatprep.subr.bf16.mxu0 0
          %1568 = vmatpush1.bf16.msra.mxu0 0
          %1569 = vmatprep.subr.bf16.mxu0 0
          %1570 = vmatpush1.bf16.msra.mxu0 0
          %1571 = vmatprep.subr.bf16.mxu0 0
          %1572 = vmatpush1.bf16.msra.mxu0 0
          %1573 = vmatprep.subr.bf16.mxu0 0
          %1574 = vmatpush1.bf16.msra.mxu0 0
          %1575 = vmatprep.subr.bf16.mxu0 0
          %1576 = vmatpush1.bf16.msra.mxu0 %v1557
          %1577 = vmatprep.subr.bf16.mxu0 0
          %1578 = vmatpush1.bf16.msra.mxu0 %v1556
          %1579 = vmatprep.subr.bf16.mxu0 0
          %1580 = vmatpush2.bf16.msra.mxu0 0
          %1581 = vmatprep.subr.bf16.mxu0 0
          %1582 = vmatpush2.bf16.msra.mxu0 0
          %1583 = vmatprep.subr.bf16.mxu0 0
          %1584 = vmatpush2.bf16.msra.mxu0 0
          %1585 = vmatprep.subr.bf16.mxu0 0
          %1586 = vmatpush2.bf16.msra.mxu0 0
          %1587 = vmatprep.subr.bf16.mxu0 0
          %1588 = vmatpush2.bf16.msra.mxu0 0
          %1589 = vmatprep.subr.bf16.mxu0 0
          %1590 = vmatpush2.bf16.msra.mxu0 0
          %1591 = vmatprep.subr.bf16.mxu0 0
          %1592 = vmatpush2.bf16.msra.mxu0 0
          %1593 = vmatprep.subr.bf16.mxu0 0
          %1594 = vmatpush2.bf16.msra.mxu0 0
          %1595 = vmatprep.mubr.bf16.mxu0 0
          %1596 = vmatmul.mubr.bf16.gmra.mxu0 %v1561
          %v1597 = vpop.f32.mrf.mxu0
          %v1598 = vadd.f32 %v1547, %v1597
          %v1599 = vpop.f32.mrf.mxu0
          %v1600 = vpop.f32.mrf.mxu0
          %v1601 = vpop.f32.mrf.mxu0
          %1602 = vdwg.mxu0
          %1603 = vst [vmem:[%s790] sm:$0x1] %v1598
        $region108: #{model_forward.1} parent=99 // pred_fallthru
          _
        %s1604 = sand.u32 %s544, 1
        %s1605 = scalar_lea.sflag [#allocation5], %s1604
        %s1606 = sand.u32 %s544, 1
        %s1607 = scalar_lea.vmem [#allocation4], %s1606
        // Predicated region
        $region109: #{model_forward.1} parent=99 // pred_check
          %p1608 = pneg %p554
        $region110: #{model_forward.1} parent=99 // pred_check_branch
          %1610 = sbr.rel (%p1608) target = $region112
        $region111: #{model_forward.1} parent=99 // pred_region
          %s1612 = ssub.s32 16, 16
          %1613 = vsyncadd %s1605, %s1612
          %s1614 = smul.addr %s38, 16
          %s1615 = scalar_lea.hbm %s20, %s1614
          %s1617 = sshll.u32 %s1607, 4
          %s1618 = int_to_ptr.vmem [resolvable:$true] %s1617
          %1620 = dma.vmem_to_hbm [thread:$0]  %s1618, 16, %s1615, %s1605
        $region112: #{model_forward.1} parent=99 // pred_fallthru
          _
      $region100: #{model_forward.1} parent=5 // pred_fallthru
        _
      %p1621 = scmp.le.s32.totalorder 2, %s29
      // Predicated region
      $region113: #{model_forward.1} parent=5 // pred_check
        %p1622 = pneg %p1621
      $region114: #{model_forward.1} parent=5 // pred_check_branch
        %1624 = sbr.rel (%p1622) target = $region116
      $region115: #{model_forward.1} parent=5 // pred_region
        %s1625 = ssub.s32 %s29, 2
        // Predicated region
        $region117: #{model_forward.1} parent=115 // pred_check
          %p1626 = pneg %p560
        $region118: #{model_forward.1} parent=115 // pred_check_branch
          %1628 = sbr.rel (%p1626) target = $region120
        $region119: #{model_forward.1} parent=115 // pred_region
          %s1629 = sand.u32 %s545, 1
          %s1630 = scalar_lea.sflag [#allocation5], %s1629
          %s1631 = sand.u32 %s545, 1
          %s1632 = scalar_lea.vmem [#allocation4], %s1631
          %1633 = dma.done %s1630, 16
        $region120: #{model_forward.1} parent=115 // pred_fallthru
          _
      $region116: #{model_forward.1} parent=5 // pred_fallthru
        _
    $region6: #{model_forward.1} parent=1 // loop_footer
      %s33 = sadd.s32 1, %s29
    $region7: #{model_forward.1} parent=1 // loop_footer_branch
      %28 = sbr.rel target = $region3
    $region8: #{model_forward.1} parent=1 // loop_exit
      _
    %1634 = vsyncpa [#allocation5], 1
    %s1635 = scalar_lea.sflag [#allocation5], 1
    %1636 = vsyncpa %s1635, 1

</llo_original>
